<compile_context>
chip_gen: v7x
topology: tpu7x:2x2x1
jax: 0.10.0
libtpu: 0.0.40
codegen_flags: <defaults>
</compile_context>

<pallas_src>
import functools

import jax
import jax.numpy as jnp
from jax import lax
from jax.experimental import pallas as pl
from jax.experimental.pallas import tpu as pltpu


# ----------------------------------------------------------------------------
# Kernel: one (batch element, L tile) per grid cell.
#   q_ref : [1, TL, E] bf16      k_ref / v_ref : [1, S, E] bf16
#   wqkv  : [E, 3E] bf16 (scaled Wq^T | Wk^T | Wv^T)   bqkv : [1, 3E] f32
#   wo    : [E, E]  bf16 (Wo^T)                        bo   : [1, E]  f32
#   o_ref : [1, TL, E]
#   scratch: kh_ref/vh_ref [S, E] bf16, attn_ref [TL, E] f32
# ----------------------------------------------------------------------------
def _attention_layer_kernel(q_ref, k_ref, v_ref, wqkv_ref, bqkv_ref,
                            wo_ref, bo_ref, o_ref,
                            kh_ref, vh_ref, attn_ref, *, heads_num):
    E = q_ref.shape[2]
    H = heads_num
    Dh = E // H

    # K/V projections depend only on the batch index -> compute once per batch
    # element (first L tile) into bf16 VMEM scratch, reuse for all L tiles.
    @pl.when(pl.program_id(1) == 0)
    def _():
        kh = jnp.dot(k_ref[0], wqkv_ref[:, E:2 * E],
                     preferred_element_type=jnp.float32) + bqkv_ref[:, E:2 * E]
        vh = jnp.dot(v_ref[0], wqkv_ref[:, 2 * E:3 * E],
                     preferred_element_type=jnp.float32) + bqkv_ref[:, 2 * E:3 * E]
        kh_ref[...] = kh.astype(kh_ref.dtype)
        vh_ref[...] = vh.astype(vh_ref.dtype)

    # Q projection for this [TL, E] tile (1/sqrt(Dh) already folded into Wq/bq).
    qh = (jnp.dot(q_ref[0], wqkv_ref[:, 0:E],
                  preferred_element_type=jnp.float32)
          + bqkv_ref[:, 0:E]).astype(jnp.bfloat16)                 # [TL, E]

    # Per-head attention; each head's output is written into its lane slice of
    # the f32 scratch accumulator (no concatenate / head-major transpose).
    # TODO(synk): for very long S, tile S with an online-softmax (flash) loop
    # so the per-head score tile is bounded by TL x TS instead of TL x S.
    for h in range(H):
        lo, hi = h * Dh, (h + 1) * Dh
        q_h = qh[:, lo:hi]                                         # [TL, Dh] bf16
        k_h = kh_ref[:, lo:hi]                                     # [S, Dh]  bf16
        v_h = vh_ref[:, lo:hi]                                     # [S, Dh]  bf16

        # Contract last dims directly (no explicit k.T materialization).
        scores = lax.dot_general(q_h, k_h, (((1,), (1,)), ((), ())),
                                 preferred_element_type=jnp.float32)  # [TL, S]
        m = jnp.max(scores, axis=-1, keepdims=True)
        p = jnp.exp(scores - m)
        denom = jnp.sum(p, axis=-1, keepdims=True)

        o_h = jnp.dot(p.astype(jnp.bfloat16), v_h,
                      preferred_element_type=jnp.float32)          # [TL, Dh]
        # Normalize AFTER the PV matmul: TL*Dh multiplies instead of TL*S.
        attn_ref[:, lo:hi] = o_h * pl.reciprocal(denom, approx=True)

    # Output projection fused in the same kernel.
    y = jnp.dot(attn_ref[...].astype(jnp.bfloat16), wo_ref[...],
                preferred_element_type=jnp.float32) + bo_ref[...]
    o_ref[0] = y.astype(o_ref.dtype)


# ----------------------------------------------------------------------------
# Wrapper / pallas_call plumbing
# ----------------------------------------------------------------------------
def _pick_l_tile(L, target=256):
    """Largest tile <= target that divides L and is sublane-aligned (mult of 8)."""
    if L <= target:
        return L
    for t in range(target, 7, -1):
        if L % t == 0 and t % 8 == 0:
            return t
    return L  # no clean divisor -> fall back to untiled L


def _vmem_limit_bytes():
    """Generation-aware VMEM limit (v5e/v6e: ~109 MiB, v7x: ~54 MiB)."""
    cap = None
    try:
        cap = pltpu.get_tpu_info().vmem_capacity_bytes
    except Exception:
        cap = None
    if not cap:
        cap = 64 * 1024 * 1024
    return min(int(cap * 0.85), 128 * 1024 * 1024)


def _weight_spec(shape, index_map):
    """Grid-invariant weight spec: single-buffered (constant index -> one DMA)."""
    try:
        return pl.BlockSpec(shape, index_map, pipeline_mode=pl.Buffered(1))
    except (TypeError, AttributeError):
        return pl.BlockSpec(shape, index_map)


def fused_attention_layer(q, k, v, wqkv, bqkv, wo_t, bo, heads_num):
    """q: [B, L, E], k/v: [B, S, E]; wqkv: [E, 3E]; wo_t: [E, E] -> [B, L, E]"""
    B, L, E = q.shape
    _, S, _ = k.shape
    assert E % heads_num == 0, "model_dim must be divisible by heads_num"
    out_dtype = q.dtype

    # bf16 MXU operands (f32 accumulation happens inside the kernel).
    bf = jnp.bfloat16
    q, k, v = q.astype(bf), k.astype(bf), v.astype(bf)
    wqkv, wo_t = wqkv.astype(bf), wo_t.astype(bf)
    bqkv = bqkv.reshape(1, 3 * E).astype(jnp.float32)
    bo = bo.reshape(1, E).astype(jnp.float32)

    TL = _pick_l_tile(L)
    n_l = L // TL

    flops = (2 * B * L * E * E            # q proj
             + 2 * B * S * E * E * 2      # k, v proj
             + 2 * B * L * S * E * 2      # scores + weighted sum (all heads)
             + 2 * B * L * E * E)         # out proj
    bytes_accessed = (2 * (q.size + k.size + v.size + wqkv.size + wo_t.size)
                      + 4 * (bqkv.size + bo.size + B * L * E))

    kern = functools.partial(_attention_layer_kernel, heads_num=heads_num)

    return pl.pallas_call(
        kern,
        out_shape=jax.ShapeDtypeStruct((B, L, E), out_dtype),
        grid_spec=pltpu.PrefetchScalarGridSpec(
            num_scalar_prefetch=0,
            grid=(B, n_l),
            in_specs=[
                pl.BlockSpec((1, TL, E), lambda b, l: (b, l, 0)),
                pl.BlockSpec((1, S, E), lambda b, l: (b, 0, 0)),
                pl.BlockSpec((1, S, E), lambda b, l: (b, 0, 0)),
                _weight_spec((E, 3 * E), lambda b, l: (0, 0)),
                _weight_spec((1, 3 * E), lambda b, l: (0, 0)),
                _weight_spec((E, E), lambda b, l: (0, 0)),
                _weight_spec((1, E), lambda b, l: (0, 0)),
            ],
            out_specs=pl.BlockSpec((1, TL, E), lambda b, l: (b, l, 0)),
            scratch_shapes=[
                pltpu.VMEM((S, E), jnp.bfloat16),   # projected K (per batch elem)
                pltpu.VMEM((S, E), jnp.bfloat16),   # projected V (per batch elem)
                pltpu.VMEM((TL, E), jnp.float32),   # merged per-head outputs
            ],
        ),
        compiler_params=pltpu.CompilerParams(
            # batch shards across TCs (megacore); L tiles sequential (scratch reuse)
            dimension_semantics=("parallel", "arbitrary"),
            vmem_limit_bytes=_vmem_limit_bytes(),
        ),
        cost_estimate=pl.CostEstimate(
            flops=flops,
            transcendentals=B * heads_num * L * S,
            bytes_accessed=bytes_accessed,
        ),
    )(q, k, v, wqkv, bqkv, wo_t, bo)


# ----------------------------------------------------------------------------
# AttentionLayer wrapper (parameters in PyTorch nn.Linear convention)
# ----------------------------------------------------------------------------
def init_attention_layer_params(key, model_dim, heads_num, dtype=jnp.float32):
    """Deterministic synthetic parameters (PyTorch nn.Linear-style shapes)."""
    k_dim = model_dim // heads_num
    keys = jax.random.split(key, 8)
    bound = 1.0 / (model_dim ** 0.5)

    def lin(kw, kb, out_dim, in_dim):
        w = jax.random.uniform(kw, (out_dim, in_dim), dtype, -bound, bound)
        b = jax.random.uniform(kb, (out_dim,), dtype, -bound, bound)
        return w, b

    return {
        "q_proj": lin(keys[0], keys[1], k_dim * heads_num, model_dim),
        "k_proj": lin(keys[2], keys[3], k_dim * heads_num, model_dim),
        "v_proj": lin(keys[4], keys[5], k_dim * heads_num, model_dim),
        "out_proj": lin(keys[6], keys[7], model_dim, model_dim),
    }


def attention_layer_forward(params, q, k, v, heads_num):
    """q: [B, L, E], k/v: [B, S, E] -> [B, L, E]"""
    wq, bq = params["q_proj"]
    wk, bk = params["k_proj"]
    wv, bv = params["v_proj"]
    wo, bo = params["out_proj"]

    E = q.shape[-1]
    Dh = E // heads_num
    scale = float(Dh) ** (-0.5)

    # One lane-dense [E, 3E] weight slab; 1/sqrt(Dh) folded into Wq / bq so the
    # kernel never multiplies scores by the scale.
    wqkv = jnp.concatenate([wq.T * scale, wk.T, wv.T], axis=1)   # [E, 3E]
    bqkv = jnp.concatenate([bq * scale, bk, bv])                 # [3E]

    return fused_attention_layer(q, k, v, wqkv, bqkv, wo.T, bo, heads_num)


# ----------------------------------------------------------------------------
# Pure-JAX reference for correctness check
# ----------------------------------------------------------------------------
def reference_forward(params, q, k, v, heads_num):
    B, L, E = q.shape
    _, S, _ = k.shape
    H = heads_num
    Dh = E // H

    def lin(x, name):
        w, b = params[name]
        return x @ w.T + b

    qh = lin(q, "q_proj").reshape(B, L, H, Dh)
    kh = lin(k, "k_proj").reshape(B, S, H, Dh)
    vh = lin(v, "v_proj").reshape(B, S, H, Dh)
    scale = Dh ** (-0.5)
    scores = jnp.einsum("blhe,bshe->bhls", qh, kh) * scale
    attn = jax.nn.softmax(scores, axis=-1)
    out = jnp.einsum("bhls,bshd->blhd", attn, vh).reshape(B, L, E)
    w_o, b_o = params["out_proj"]
    return out @ w_o.T + b_o


if __name__ == "__main__":
    B, L, S = 2, 8, 8
    model_dim, heads_num = 32, 4

    key = jax.random.PRNGKey(0)
    kq, kk, kv, kp = jax.random.split(key, 4)
    q = jax.random.normal(kq, (B, L, model_dim), jnp.float32)
    k = jax.random.normal(kk, (B, S, model_dim), jnp.float32)
    v = jax.random.normal(kv, (B, S, model_dim), jnp.float32)

    params = init_attention_layer_params(kp, model_dim, heads_num)

    out = attention_layer_forward(params, q, k, v, heads_num)
    out = jax.block_until_ready(out)

    ref = reference_forward(params, q, k, v, heads_num)
    assert out.shape == (B, L, model_dim)
    # bf16 MXU operands with f32 accumulation -> loosen tolerance vs f32 reference.
    assert jnp.allclose(out, ref, atol=5e-2, rtol=5e-2), "mismatch vs reference"

    print("KERNEL_OK")
</pallas_src>

<mosaic_0001>
module attributes {stable_mosaic.version = 11 : i64} {
  func.func @_attention_layer_kernel(%arg0: i32, %arg1: i32, %arg2: memref<1x8x32xbf16, #tpu.memory_space<vmem>>, %arg3: memref<1x8x32xbf16, #tpu.memory_space<vmem>>, %arg4: memref<1x8x32xbf16, #tpu.memory_space<vmem>>, %arg5: memref<32x96xbf16, #tpu.memory_space<vmem>>, %arg6: memref<1x96xf32, #tpu.memory_space<vmem>>, %arg7: memref<32x32xbf16, #tpu.memory_space<vmem>>, %arg8: memref<1x32xf32, #tpu.memory_space<vmem>>, %arg9: memref<1x8x32xf32, #tpu.memory_space<vmem>>, %arg10: memref<8x32xbf16, #tpu.memory_space<vmem>>, %arg11: memref<8x32xbf16, #tpu.memory_space<vmem>>, %arg12: memref<8x32xf32, #tpu.memory_space<vmem>>) attributes {dimension_semantics = [#tpu.dimension_semantics<parallel>, #tpu.dimension_semantics<arbitrary>], iteration_bounds = array<i64: 2, 1>, scalar_prefetch = 0 : i64, scratch_operands = 3 : i64, tpu.core_type = #tpu.core_type<tc>, window_params = [{transform_indices = @transform_0, window_bounds = array<i64: 1, 8, 32>}, {transform_indices = @transform_1, window_bounds = array<i64: 1, 8, 32>}, {transform_indices = @transform_2, window_bounds = array<i64: 1, 8, 32>}, {pipeline_mode = #tpu.pipeline_mode<synchronous>, transform_indices = @transform_3, window_bounds = array<i64: 32, 96>}, {pipeline_mode = #tpu.pipeline_mode<synchronous>, transform_indices = @transform_4, window_bounds = array<i64: 1, 96>}, {pipeline_mode = #tpu.pipeline_mode<synchronous>, transform_indices = @transform_5, window_bounds = array<i64: 32, 32>}, {pipeline_mode = #tpu.pipeline_mode<synchronous>, transform_indices = @transform_6, window_bounds = array<i64: 1, 32>}, {transform_indices = @transform_7, window_bounds = array<i64: 1, 8, 32>}]} {
    %c0_i32 = arith.constant 0 : i32
    %0 = arith.cmpi eq, %arg1, %c0_i32 : i32
    %1 = arith.extui %0 : i1 to i32
    %c0_i32_0 = arith.constant 0 : i32
    %2 = arith.cmpi ne, %1, %c0_i32_0 : i32
    scf.if %2 {
      %c0_54 = arith.constant 0 : index
      %c0_55 = arith.constant 0 : index
      %c0_56 = arith.constant 0 : index
      %89 = vector.load %arg3[%c0_54, %c0_55, %c0_56] : memref<1x8x32xbf16, #tpu.memory_space<vmem>>, vector<1x8x32xbf16>
      %90 = vector.shape_cast %89 : vector<1x8x32xbf16> to vector<8x32xbf16>
      %c0_57 = arith.constant 0 : index
      %c32 = arith.constant 32 : index
      %91 = vector.load %arg5[%c0_57, %c32] : memref<32x96xbf16, #tpu.memory_space<vmem>>, vector<32x32xbf16>
      %cst_58 = arith.constant dense<0.000000e+00> : vector<8x32xf32>
      %92 = tpu.matmul %90, %91, %cst_58 {dimension_numbers = #tpu.dot_dimension_numbers<[1], [0], [0], [1], [0, 0, 1, 1], [], []>} : vector<8x32xbf16>, vector<32x32xbf16>, vector<8x32xf32> -> vector<8x32xf32>
      %c0_59 = arith.constant 0 : index
      %c32_60 = arith.constant 32 : index
      %93 = vector.load %arg6[%c0_59, %c32_60] : memref<1x96xf32, #tpu.memory_space<vmem>>, vector<1x32xf32>
      %94 = vector.broadcast %93 : vector<1x32xf32> to vector<8x32xf32>
      %95 = arith.addf %92, %94 : vector<8x32xf32>
      %c0_61 = arith.constant 0 : index
      %c0_62 = arith.constant 0 : index
      %c0_63 = arith.constant 0 : index
      %96 = vector.load %arg4[%c0_61, %c0_62, %c0_63] : memref<1x8x32xbf16, #tpu.memory_space<vmem>>, vector<1x8x32xbf16>
      %97 = vector.shape_cast %96 : vector<1x8x32xbf16> to vector<8x32xbf16>
      %c0_64 = arith.constant 0 : index
      %c64 = arith.constant 64 : index
      %98 = vector.load %arg5[%c0_64, %c64] : memref<32x96xbf16, #tpu.memory_space<vmem>>, vector<32x32xbf16>
      %cst_65 = arith.constant dense<0.000000e+00> : vector<8x32xf32>
      %99 = tpu.matmul %97, %98, %cst_65 {dimension_numbers = #tpu.dot_dimension_numbers<[1], [0], [0], [1], [0, 0, 1, 1], [], []>} : vector<8x32xbf16>, vector<32x32xbf16>, vector<8x32xf32> -> vector<8x32xf32>
      %c0_66 = arith.constant 0 : index
      %c64_67 = arith.constant 64 : index
      %100 = vector.load %arg6[%c0_66, %c64_67] : memref<1x96xf32, #tpu.memory_space<vmem>>, vector<1x32xf32>
      %101 = vector.broadcast %100 : vector<1x32xf32> to vector<8x32xf32>
      %102 = arith.addf %99, %101 : vector<8x32xf32>
      %103 = arith.truncf %95 : vector<8x32xf32> to vector<8x32xbf16>
      %c0_68 = arith.constant 0 : index
      %c0_69 = arith.constant 0 : index
      %104 = vector.load %arg10[%c0_68, %c0_69] : memref<8x32xbf16, #tpu.memory_space<vmem>>, vector<8x32xbf16>
      tpu.vector_store %arg10[%c0_68, %c0_69], %103 {strides = array<i32>} : memref<8x32xbf16, #tpu.memory_space<vmem>>, vector<8x32xbf16>,
      %105 = arith.truncf %102 : vector<8x32xf32> to vector<8x32xbf16>
      %c0_70 = arith.constant 0 : index
      %c0_71 = arith.constant 0 : index
      %106 = vector.load %arg11[%c0_70, %c0_71] : memref<8x32xbf16, #tpu.memory_space<vmem>>, vector<8x32xbf16>
      tpu.vector_store %arg11[%c0_70, %c0_71], %105 {strides = array<i32>} : memref<8x32xbf16, #tpu.memory_space<vmem>>, vector<8x32xbf16>,
    } else {
    }
    %c0 = arith.constant 0 : index
    %c0_1 = arith.constant 0 : index
    %c0_2 = arith.constant 0 : index
    %3 = vector.load %arg2[%c0, %c0_1, %c0_2] : memref<1x8x32xbf16, #tpu.memory_space<vmem>>, vector<1x8x32xbf16>
    %4 = vector.shape_cast %3 : vector<1x8x32xbf16> to vector<8x32xbf16>
    %c0_3 = arith.constant 0 : index
    %c0_4 = arith.constant 0 : index
    %5 = vector.load %arg5[%c0_3, %c0_4] : memref<32x96xbf16, #tpu.memory_space<vmem>>, vector<32x32xbf16>
    %cst = arith.constant dense<0.000000e+00> : vector<8x32xf32>
    %6 = tpu.matmul %4, %5, %cst {dimension_numbers = #tpu.dot_dimension_numbers<[1], [0], [0], [1], [0, 0, 1, 1], [], []>} : vector<8x32xbf16>, vector<32x32xbf16>, vector<8x32xf32> -> vector<8x32xf32>
    %c0_5 = arith.constant 0 : index
    %c0_6 = arith.constant 0 : index
    %7 = vector.load %arg6[%c0_5, %c0_6] : memref<1x96xf32, #tpu.memory_space<vmem>>, vector<1x32xf32>
    %8 = vector.broadcast %7 : vector<1x32xf32> to vector<8x32xf32>
    %9 = arith.addf %6, %8 : vector<8x32xf32>
    %10 = arith.truncf %9 : vector<8x32xf32> to vector<8x32xbf16>
    %11 = vector.extract_strided_slice %10 {offsets = [0, 0], sizes = [8, 8], strides = [1, 1]} : vector<8x32xbf16> to vector<8x8xbf16>
    %c0_7 = arith.constant 0 : index
    %c0_8 = arith.constant 0 : index
    %12 = vector.load %arg10[%c0_7, %c0_8] : memref<8x32xbf16, #tpu.memory_space<vmem>>, vector<8x8xbf16>
    %c0_9 = arith.constant 0 : index
    %c0_10 = arith.constant 0 : index
    %13 = vector.load %arg11[%c0_9, %c0_10] : memref<8x32xbf16, #tpu.memory_space<vmem>>, vector<8x8xbf16>
    %cst_11 = arith.constant dense<0.000000e+00> : vector<8x8xf32>
    %14 = tpu.matmul %11, %12, %cst_11 {dimension_numbers = #tpu.dot_dimension_numbers<[1], [1], [0], [0], [0, 0, 1, 0], [], []>} : vector<8x8xbf16>, vector<8x8xbf16>, vector<8x8xf32> -> vector<8x8xf32>
    %cst_12 = arith.constant dense<0xFF800000> : vector<8xf32>
    %15 = vector.multi_reduction <maximumf>, %14, %cst_12 [1] : vector<8x8xf32> to vector<8xf32>
    %16 = vector.shape_cast %15 : vector<8xf32> to vector<8x1xf32>
    %17 = vector.broadcast %16 : vector<8x1xf32> to vector<8x8xf32>
    %18 = arith.subf %14, %17 : vector<8x8xf32>
    %19 = math.exp %18 : vector<8x8xf32>
    %cst_13 = arith.constant dense<0.000000e+00> : vector<8xf32>
    %20 = vector.multi_reduction <add>, %19, %cst_13 [1] : vector<8x8xf32> to vector<8xf32>
    %21 = vector.shape_cast %20 : vector<8xf32> to vector<8x1xf32>
    %22 = arith.truncf %19 : vector<8x8xf32> to vector<8x8xbf16>
    %cst_14 = arith.constant dense<0.000000e+00> : vector<8x8xf32>
    %23 = tpu.matmul %22, %13, %cst_14 {dimension_numbers = #tpu.dot_dimension_numbers<[1], [0], [0], [1], [0, 0, 1, 1], [], []>} : vector<8x8xbf16>, vector<8x8xbf16>, vector<8x8xf32> -> vector<8x8xf32>
    %24 = tpu.reciprocal %21 {approx = true} : vector<8x1xf32> -> vector<8x1xf32>
    %25 = vector.broadcast %24 : vector<8x1xf32> to vector<8x8xf32>
    %26 = arith.mulf %23, %25 : vector<8x8xf32>
    %c0_15 = arith.constant 0 : index
    %c0_16 = arith.constant 0 : index
    %27 = vector.load %arg12[%c0_15, %c0_16] : memref<8x32xf32, #tpu.memory_space<vmem>>, vector<8x8xf32>
    tpu.vector_store %arg12[%c0_15, %c0_16], %26 {strides = array<i32>} : memref<8x32xf32, #tpu.memory_space<vmem>>, vector<8x8xf32>,
    %28 = vector.extract_strided_slice %10 {offsets = [0, 8], sizes = [8, 8], strides = [1, 1]} : vector<8x32xbf16> to vector<8x8xbf16>
    %c0_17 = arith.constant 0 : index
    %c8 = arith.constant 8 : index
    %29 = vector.load %arg10[%c0_17, %c8] : memref<8x32xbf16, #tpu.memory_space<vmem>>, vector<8x8xbf16>
    %c0_18 = arith.constant 0 : index
    %c8_19 = arith.constant 8 : index
    %30 = vector.load %arg11[%c0_18, %c8_19] : memref<8x32xbf16, #tpu.memory_space<vmem>>, vector<8x8xbf16>
    %cst_20 = arith.constant dense<0.000000e+00> : vector<8x8xf32>
    %31 = tpu.matmul %28, %29, %cst_20 {dimension_numbers = #tpu.dot_dimension_numbers<[1], [1], [0], [0], [0, 0, 1, 0], [], []>} : vector<8x8xbf16>, vector<8x8xbf16>, vector<8x8xf32> -> vector<8x8xf32>
    %cst_21 = arith.constant dense<0xFF800000> : vector<8xf32>
    %32 = vector.multi_reduction <maximumf>, %31, %cst_21 [1] : vector<8x8xf32> to vector<8xf32>
    %33 = vector.shape_cast %32 : vector<8xf32> to vector<8x1xf32>
    %34 = vector.broadcast %33 : vector<8x1xf32> to vector<8x8xf32>
    %35 = arith.subf %31, %34 : vector<8x8xf32>
    %36 = math.exp %35 : vector<8x8xf32>
    %cst_22 = arith.constant dense<0.000000e+00> : vector<8xf32>
    %37 = vector.multi_reduction <add>, %36, %cst_22 [1] : vector<8x8xf32> to vector<8xf32>
    %38 = vector.shape_cast %37 : vector<8xf32> to vector<8x1xf32>
    %39 = arith.truncf %36 : vector<8x8xf32> to vector<8x8xbf16>
    %cst_23 = arith.constant dense<0.000000e+00> : vector<8x8xf32>
    %40 = tpu.matmul %39, %30, %cst_23 {dimension_numbers = #tpu.dot_dimension_numbers<[1], [0], [0], [1], [0, 0, 1, 1], [], []>} : vector<8x8xbf16>, vector<8x8xbf16>, vector<8x8xf32> -> vector<8x8xf32>
    %41 = tpu.reciprocal %38 {approx = true} : vector<8x1xf32> -> vector<8x1xf32>
    %42 = vector.broadcast %41 : vector<8x1xf32> to vector<8x8xf32>
    %43 = arith.mulf %40, %42 : vector<8x8xf32>
    %c0_24 = arith.constant 0 : index
    %c8_25 = arith.constant 8 : index
    %44 = vector.load %arg12[%c0_24, %c8_25] : memref<8x32xf32, #tpu.memory_space<vmem>>, vector<8x8xf32>
    tpu.vector_store %arg12[%c0_24, %c8_25], %43 {strides = array<i32>} : memref<8x32xf32, #tpu.memory_space<vmem>>, vector<8x8xf32>,
    %45 = vector.extract_strided_slice %10 {offsets = [0, 16], sizes = [8, 8], strides = [1, 1]} : vector<8x32xbf16> to vector<8x8xbf16>
    %c0_26 = arith.constant 0 : index
    %c16 = arith.constant 16 : index
    %46 = vector.load %arg10[%c0_26, %c16] : memref<8x32xbf16, #tpu.memory_space<vmem>>, vector<8x8xbf16>
    %c0_27 = arith.constant 0 : index
    %c16_28 = arith.constant 16 : index
    %47 = vector.load %arg11[%c0_27, %c16_28] : memref<8x32xbf16, #tpu.memory_space<vmem>>, vector<8x8xbf16>
    %cst_29 = arith.constant dense<0.000000e+00> : vector<8x8xf32>
    %48 = tpu.matmul %45, %46, %cst_29 {dimension_numbers = #tpu.dot_dimension_numbers<[1], [1], [0], [0], [0, 0, 1, 0], [], []>} : vector<8x8xbf16>, vector<8x8xbf16>, vector<8x8xf32> -> vector<8x8xf32>
    %cst_30 = arith.constant dense<0xFF800000> : vector<8xf32>
    %49 = vector.multi_reduction <maximumf>, %48, %cst_30 [1] : vector<8x8xf32> to vector<8xf32>
    %50 = vector.shape_cast %49 : vector<8xf32> to vector<8x1xf32>
    %51 = vector.broadcast %50 : vector<8x1xf32> to vector<8x8xf32>
    %52 = arith.subf %48, %51 : vector<8x8xf32>
    %53 = math.exp %52 : vector<8x8xf32>
    %cst_31 = arith.constant dense<0.000000e+00> : vector<8xf32>
    %54 = vector.multi_reduction <add>, %53, %cst_31 [1] : vector<8x8xf32> to vector<8xf32>
    %55 = vector.shape_cast %54 : vector<8xf32> to vector<8x1xf32>
    %56 = arith.truncf %53 : vector<8x8xf32> to vector<8x8xbf16>
    %cst_32 = arith.constant dense<0.000000e+00> : vector<8x8xf32>
    %57 = tpu.matmul %56, %47, %cst_32 {dimension_numbers = #tpu.dot_dimension_numbers<[1], [0], [0], [1], [0, 0, 1, 1], [], []>} : vector<8x8xbf16>, vector<8x8xbf16>, vector<8x8xf32> -> vector<8x8xf32>
    %58 = tpu.reciprocal %55 {approx = true} : vector<8x1xf32> -> vector<8x1xf32>
    %59 = vector.broadcast %58 : vector<8x1xf32> to vector<8x8xf32>
    %60 = arith.mulf %57, %59 : vector<8x8xf32>
    %c0_33 = arith.constant 0 : index
    %c16_34 = arith.constant 16 : index
    %61 = vector.load %arg12[%c0_33, %c16_34] : memref<8x32xf32, #tpu.memory_space<vmem>>, vector<8x8xf32>
    tpu.vector_store %arg12[%c0_33, %c16_34], %60 {strides = array<i32>} : memref<8x32xf32, #tpu.memory_space<vmem>>, vector<8x8xf32>,
    %62 = vector.extract_strided_slice %10 {offsets = [0, 24], sizes = [8, 8], strides = [1, 1]} : vector<8x32xbf16> to vector<8x8xbf16>
    %c0_35 = arith.constant 0 : index
    %c24 = arith.constant 24 : index
    %63 = vector.load %arg10[%c0_35, %c24] : memref<8x32xbf16, #tpu.memory_space<vmem>>, vector<8x8xbf16>
    %c0_36 = arith.constant 0 : index
    %c24_37 = arith.constant 24 : index
    %64 = vector.load %arg11[%c0_36, %c24_37] : memref<8x32xbf16, #tpu.memory_space<vmem>>, vector<8x8xbf16>
    %cst_38 = arith.constant dense<0.000000e+00> : vector<8x8xf32>
    %65 = tpu.matmul %62, %63, %cst_38 {dimension_numbers = #tpu.dot_dimension_numbers<[1], [1], [0], [0], [0, 0, 1, 0], [], []>} : vector<8x8xbf16>, vector<8x8xbf16>, vector<8x8xf32> -> vector<8x8xf32>
    %cst_39 = arith.constant dense<0xFF800000> : vector<8xf32>
    %66 = vector.multi_reduction <maximumf>, %65, %cst_39 [1] : vector<8x8xf32> to vector<8xf32>
    %67 = vector.shape_cast %66 : vector<8xf32> to vector<8x1xf32>
    %68 = vector.broadcast %67 : vector<8x1xf32> to vector<8x8xf32>
    %69 = arith.subf %65, %68 : vector<8x8xf32>
    %70 = math.exp %69 : vector<8x8xf32>
    %cst_40 = arith.constant dense<0.000000e+00> : vector<8xf32>
    %71 = vector.multi_reduction <add>, %70, %cst_40 [1] : vector<8x8xf32> to vector<8xf32>
    %72 = vector.shape_cast %71 : vector<8xf32> to vector<8x1xf32>
    %73 = arith.truncf %70 : vector<8x8xf32> to vector<8x8xbf16>
    %cst_41 = arith.constant dense<0.000000e+00> : vector<8x8xf32>
    %74 = tpu.matmul %73, %64, %cst_41 {dimension_numbers = #tpu.dot_dimension_numbers<[1], [0], [0], [1], [0, 0, 1, 1], [], []>} : vector<8x8xbf16>, vector<8x8xbf16>, vector<8x8xf32> -> vector<8x8xf32>
    %75 = tpu.reciprocal %72 {approx = true} : vector<8x1xf32> -> vector<8x1xf32>
    %76 = vector.broadcast %75 : vector<8x1xf32> to vector<8x8xf32>
    %77 = arith.mulf %74, %76 : vector<8x8xf32>
    %c0_42 = arith.constant 0 : index
    %c24_43 = arith.constant 24 : index
    %78 = vector.load %arg12[%c0_42, %c24_43] : memref<8x32xf32, #tpu.memory_space<vmem>>, vector<8x8xf32>
    tpu.vector_store %arg12[%c0_42, %c24_43], %77 {strides = array<i32>} : memref<8x32xf32, #tpu.memory_space<vmem>>, vector<8x8xf32>,
    %c0_44 = arith.constant 0 : index
    %c0_45 = arith.constant 0 : index
    %79 = vector.load %arg12[%c0_44, %c0_45] : memref<8x32xf32, #tpu.memory_space<vmem>>, vector<8x32xf32>
    %80 = arith.truncf %79 : vector<8x32xf32> to vector<8x32xbf16>
    %c0_46 = arith.constant 0 : index
    %c0_47 = arith.constant 0 : index
    %81 = vector.load %arg7[%c0_46, %c0_47] : memref<32x32xbf16, #tpu.memory_space<vmem>>, vector<32x32xbf16>
    %cst_48 = arith.constant dense<0.000000e+00> : vector<8x32xf32>
    %82 = tpu.matmul %80, %81, %cst_48 {dimension_numbers = #tpu.dot_dimension_numbers<[1], [0], [0], [1], [0, 0, 1, 1], [], []>} : vector<8x32xbf16>, vector<32x32xbf16>, vector<8x32xf32> -> vector<8x32xf32>
    %c0_49 = arith.constant 0 : index
    %c0_50 = arith.constant 0 : index
    %83 = vector.load %arg8[%c0_49, %c0_50] : memref<1x32xf32, #tpu.memory_space<vmem>>, vector<1x32xf32>
    %84 = vector.broadcast %83 : vector<1x32xf32> to vector<8x32xf32>
    %85 = arith.addf %82, %84 : vector<8x32xf32>
    %c0_51 = arith.constant 0 : index
    %c0_52 = arith.constant 0 : index
    %c0_53 = arith.constant 0 : index
    %86 = vector.load %arg9[%c0_51, %c0_52, %c0_53] : memref<1x8x32xf32, #tpu.memory_space<vmem>>, vector<1x8x32xf32>
    %87 = vector.shape_cast %86 : vector<1x8x32xf32> to vector<8x32xf32>
    %88 = vector.shape_cast %85 : vector<8x32xf32> to vector<1x8x32xf32>
    tpu.vector_store %arg9[%c0_51, %c0_52, %c0_53], %88 {strides = array<i32>} : memref<1x8x32xf32, #tpu.memory_space<vmem>>, vector<1x8x32xf32>,
    return
  }
  func.func @transform_0(%arg0: i32, %arg1: i32) -> (i32, i32, i32) {
    %c0_i32 = arith.constant 0 : i32
    %c0_i32_0 = arith.constant 0 : i32
    return %arg0, %arg1, %c0_i32 : i32, i32, i32
  }
  func.func @transform_1(%arg0: i32, %arg1: i32) -> (i32, i32, i32) {
    %c0_i32 = arith.constant 0 : i32
    %c0_i32_0 = arith.constant 0 : i32
    %c0_i32_1 = arith.constant 0 : i32
    return %arg0, %c0_i32, %c0_i32_0 : i32, i32, i32
  }
  func.func @transform_2(%arg0: i32, %arg1: i32) -> (i32, i32, i32) {
    %c0_i32 = arith.constant 0 : i32
    %c0_i32_0 = arith.constant 0 : i32
    %c0_i32_1 = arith.constant 0 : i32
    return %arg0, %c0_i32, %c0_i32_0 : i32, i32, i32
  }
  func.func @transform_3(%arg0: i32, %arg1: i32) -> (i32, i32) {
    %c0_i32 = arith.constant 0 : i32
    %c0_i32_0 = arith.constant 0 : i32
    %c0_i32_1 = arith.constant 0 : i32
    return %c0_i32, %c0_i32_0 : i32, i32
  }
  func.func @transform_4(%arg0: i32, %arg1: i32) -> (i32, i32) {
    %c0_i32 = arith.constant 0 : i32
    %c0_i32_0 = arith.constant 0 : i32
    %c0_i32_1 = arith.constant 0 : i32
    return %c0_i32, %c0_i32_0 : i32, i32
  }
  func.func @transform_5(%arg0: i32, %arg1: i32) -> (i32, i32) {
    %c0_i32 = arith.constant 0 : i32
    %c0_i32_0 = arith.constant 0 : i32
    %c0_i32_1 = arith.constant 0 : i32
    return %c0_i32, %c0_i32_0 : i32, i32
  }
  func.func @transform_6(%arg0: i32, %arg1: i32) -> (i32, i32) {
    %c0_i32 = arith.constant 0 : i32
    %c0_i32_0 = arith.constant 0 : i32
    %c0_i32_1 = arith.constant 0 : i32
    return %c0_i32, %c0_i32_0 : i32, i32
  }
  func.func @transform_7(%arg0: i32, %arg1: i32) -> (i32, i32, i32) {
    %c0_i32 = arith.constant 0 : i32
    %c0_i32_0 = arith.constant 0 : i32
    return %arg0, %arg1, %c0_i32 : i32, i32, i32
  }
}

</mosaic_0001>

<llo_original>
// kernel: tpu_custom_call.1
$region0: #{tpu_custom_call.1}
  #allocation0 [shape = 'u32[]', space=smem, size = 0x4, offset = 0x4, fixed_abs, tag = 'smem constant byte address 0x4 - core index']
  #allocation1 [shape = 'u32[144,128]{1,0:T(1,128)}', space=vmem, size = 0x12000, scoped, tag = 'internal scratch']
  #allocation2 [shape = 'bf16[8,32]{1,0:T(8,128)(2,1)}', space=vmem, size = 0x800, scoped, tag = 'scratch operand']
  #allocation3 [shape = 'bf16[8,32]{1,0:T(8,128)(2,1)}', space=vmem, size = 0x800, scoped, tag = 'scratch operand']
  #allocation4 [shape = 'f32[8,32]{1,0:T(8,128)}', space=vmem, size = 0x1000, scoped, tag = 'scratch operand']
  %s0 = inlined_call_operand.hbm [shape: bf16[2,8,32], index: 0, kind: input, shape index: {}]
  %s1 = inlined_call_operand.hbm [shape: bf16[2,8,32], index: 1, kind: input, shape index: {}]
  %s2 = inlined_call_operand.hbm [shape: bf16[2,8,32], index: 2, kind: input, shape index: {}]
  %s3 = inlined_call_operand.hbm [shape: bf16[32,96], index: 3, kind: input, shape index: {}]
  %s4 = inlined_call_operand.vmem [shape: f32[1,96], index: 4, kind: input, shape index: {}]
  %s5 = inlined_call_operand.vmem [shape: bf16[32,32], index: 5, kind: input, shape index: {}]
  %s6 = inlined_call_operand.vmem [shape: f32[1,32], index: 6, kind: input, shape index: {}]
  %s7 = inlined_call_operand.hbm [shape: f32[2,8,32], index: 7, kind: output, shape index: {}]
  %s8 = sld [smem:[#allocation0]]
  $region81: #{tpu_custom_call.1} parent=0
    _
  %s10 = ssub.s32 1, %s8
  %s11 = scalar_select 0, %s10, %s8
  $region1: #{tpu_custom_call.1} parent=0
    #allocation5 [shape = 'u8[4096]{0}', space=vmem, size = 0x1000, scoped, tag = 'input window, operand 0']
    #allocation6 [shape = 's32[2]{0}', space=sflag, size = 0x8, scoped, tag = 'scoped memory for tpu_custom_call.1']
    #allocation7 [shape = 's32[2]{0}', space=sflag, size = 0x8, scoped, tag = 'scoped memory for tpu_custom_call.1']
    #allocation8 [shape = 'u8[4096]{0}', space=vmem, size = 0x1000, scoped, tag = 'input window, operand 1']
    #allocation9 [shape = 's32[2]{0}', space=sflag, size = 0x8, scoped, tag = 'scoped memory for tpu_custom_call.1']
    #allocation10 [shape = 'u8[4096]{0}', space=vmem, size = 0x1000, scoped, tag = 'input window, operand 2']
    #allocation11 [shape = 'u8[8192]{0}', space=vmem, size = 0x2000, scoped, tag = 'input window, operand 3, single buffered']
    #allocation12 [shape = 's32[1]{0}', space=sflag, size = 0x4, scoped, tag = 'scoped memory for tpu_custom_call.1']
    #allocation13 [shape = 'u8[8192]{0}', space=vmem, size = 0x2000, scoped, tag = 'output window, operand 0']
    %12 = vsyncpa [#allocation6], 0
    %s13 = scalar_lea.sflag [#allocation6], 1
    %14 = vsyncpa %s13, 0
    %15 = vsyncpa [#allocation9], 0
    %s16 = scalar_lea.sflag [#allocation9], 1
    %17 = vsyncpa %s16, 0
    %18 = vsyncpa [#allocation12], 0
    %19 = vsyncpa [#allocation7], 0
    %s20 = scalar_lea.sflag [#allocation7], 1
    %21 = vsyncpa %s20, 0
    loop: start=0, step=1, limit=4
    $region2: #{tpu_custom_call.1} parent=1 // loop_pre_header
      _
    $region3: #{tpu_custom_call.1} parent=1 // loop_header
      %s23 = sphi 0, %s27
      %p24 = scmp.ge.s32.totalorder %s23, 4
      %s30 = sphi 0, %s42
      %s31 = sphi 0, %s38
      %s32 = sphi 0, %s30
      %s33 = sphi 0, %s31
      %s34 = sphi 0, %s32
      %s35 = sphi 0, %s33
      %s47 = sphi 0, %s49
      %s50 = sphi 0, %s47
      %s51 = sphi 0, %s50
      %s67 = sphi 0, %s51
      %s73 = sphi 0, %s75
      %s76 = sphi 0, %s73
      %s77 = sphi 0, %s76
      %s93 = sphi 0, %s77
      %s99 = sphi 0, %s101
      %s102 = sphi 0, %s99
      %s103 = sphi 0, %s102
      %s119 = sphi 0, %s103
      %s123 = sphi 0, %s123
      %s125 = sphi 0, %s123
      %s126 = sphi 0, %s125
      %s140 = sphi 0, %s126
      %s144 = sphi 0, %s144
      %s146 = sphi 0, %s144
      %s147 = sphi 0, %s146
      %s161 = sphi 0, %s147
      %s165 = sphi 0, %s165
      %s167 = sphi 0, %s165
      %s168 = sphi 0, %s167
      %s182 = sphi 0, %s168
      %s186 = sphi 0, %s186
      %s188 = sphi 0, %s186
      %s189 = sphi 0, %s188
      %s203 = sphi 0, %s189
      %s211 = sphi 0, %s213
      %s214 = sphi 0, %s211
      %s215 = sphi 0, %s214
      %s231 = sphi 0, %s215
    $region4: #{tpu_custom_call.1} parent=1 // loop_header_branch
      %26 = sbr.rel (%p24) target = $region8
    $region5: #{tpu_custom_call.1} parent=1 // loop_body
      %s28 = ssub.s32 %s23, 1
      %s29 = ssub.s32 %s23, 2
      %s36 = sadd.s32 1, %s31
      %p37 = scmp.ge.s32.totalorder %s36, 1
      %s38 = scalar_select %p37, 0, %s36
      %s39 = sadd.s32 1, %s30
      %s40 = scalar_select %p37, %s39, %s30
      %p41 = scmp.ge.s32.totalorder %s40, 2
      %s42 = scalar_select %p41, 0, %s40
      %s43 = ssub.s32 %s30, %s42
      %s44 = ssub.s32 %s31, %s38
      %s45 = sor.u32 %s43, %s44
      %p46 = scmp.eq.s32.totalorder %s45, 0
      %s48 = sadd.s32 %s47, 1
      %s49 = scalar_select %p46, %s47, %s48
      %p52 = pneg %p46
      %p53 = scmp.eq.s32.totalorder %s23, 1
      %p54 = por %p52, %p53
      %p55 = scmp.ne.s32.totalorder %s47, %s50
      %p56 = scmp.eq.s32.totalorder %s23, 0
      %p57 = por %p55, %p56
      %p58 = scmp.ne.s32.totalorder %s47, %s50
      %p59 = scmp.eq.s32.totalorder %s28, 1
      %p60 = por %p58, %p59
      %p61 = scmp.ne.s32.totalorder %s50, %s51
      %p62 = scmp.eq.s32.totalorder %s28, 0
      %p63 = por %p61, %p62
      %p64 = scmp.ne.s32.totalorder %s50, %s51
      %p65 = scmp.eq.s32.totalorder %s29, 1
      %p66 = por %p64, %p65
      %p68 = scmp.ne.s32.totalorder %s51, %s67
      %p69 = scmp.eq.s32.totalorder %s29, 0
      %p70 = por %p68, %p69
      %s71 = ssub.s32 %s30, %s42
      %p72 = scmp.eq.s32.totalorder %s71, 0
      %s74 = sadd.s32 %s73, 1
      %s75 = scalar_select %p72, %s73, %s74
      %p78 = pneg %p72
      %p79 = scmp.eq.s32.totalorder %s23, 1
      %p80 = por %p78, %p79
      %p81 = scmp.ne.s32.totalorder %s73, %s76
      %p82 = scmp.eq.s32.totalorder %s23, 0
      %p83 = por %p81, %p82
      %p84 = scmp.ne.s32.totalorder %s73, %s76
      %p85 = scmp.eq.s32.totalorder %s28, 1
      %p86 = por %p84, %p85
      %p87 = scmp.ne.s32.totalorder %s76, %s77
      %p88 = scmp.eq.s32.totalorder %s28, 0
      %p89 = por %p87, %p88
      %p90 = scmp.ne.s32.totalorder %s76, %s77
      %p91 = scmp.eq.s32.totalorder %s29, 1
      %p92 = por %p90, %p91
      %p94 = scmp.ne.s32.totalorder %s77, %s93
      %p95 = scmp.eq.s32.totalorder %s29, 0
      %p96 = por %p94, %p95
      %s97 = ssub.s32 %s30, %s42
      %p98 = scmp.eq.s32.totalorder %s97, 0
      %s100 = sadd.s32 %s99, 1
      %s101 = scalar_select %p98, %s99, %s100
      %p104 = pneg %p98
      %p105 = scmp.eq.s32.totalorder %s23, 1
      %p106 = por %p104, %p105
      %p107 = scmp.ne.s32.totalorder %s99, %s102
      %p108 = scmp.eq.s32.totalorder %s23, 0
      %p109 = por %p107, %p108
      %p110 = scmp.ne.s32.totalorder %s99, %s102
      %p111 = scmp.eq.s32.totalorder %s28, 1
      %p112 = por %p110, %p111
      %p113 = scmp.ne.s32.totalorder %s102, %s103
      %p114 = scmp.eq.s32.totalorder %s28, 0
      %p115 = por %p113, %p114
      %p116 = scmp.ne.s32.totalorder %s102, %s103
      %p117 = scmp.eq.s32.totalorder %s29, 1
      %p118 = por %p116, %p117
      %p120 = scmp.ne.s32.totalorder %s103, %s119
      %p121 = scmp.eq.s32.totalorder %s29, 0
      %p122 = por %p120, %p121
      %s124 = sadd.s32 %s123, 1
      %p127 = scmp.eq.s32.totalorder %s23, 1
      %p128 = scmp.ne.s32.totalorder %s123, %s125
      %p129 = scmp.eq.s32.totalorder %s23, 0
      %p130 = por %p128, %p129
      %p131 = scmp.ne.s32.totalorder %s123, %s125
      %p132 = scmp.eq.s32.totalorder %s28, 1
      %p133 = por %p131, %p132
      %p134 = scmp.ne.s32.totalorder %s125, %s126
      %p135 = scmp.eq.s32.totalorder %s28, 0
      %p136 = por %p134, %p135
      %p137 = scmp.ne.s32.totalorder %s125, %s126
      %p138 = scmp.eq.s32.totalorder %s29, 1
      %p139 = por %p137, %p138
      %p141 = scmp.ne.s32.totalorder %s126, %s140
      %p142 = scmp.eq.s32.totalorder %s29, 0
      %p143 = por %p141, %p142
      %s145 = sadd.s32 %s144, 1
      %p148 = scmp.eq.s32.totalorder %s23, 1
      %p149 = scmp.ne.s32.totalorder %s144, %s146
      %p150 = scmp.eq.s32.totalorder %s23, 0
      %p151 = por %p149, %p150
      %p152 = scmp.ne.s32.totalorder %s144, %s146
      %p153 = scmp.eq.s32.totalorder %s28, 1
      %p154 = por %p152, %p153
      %p155 = scmp.ne.s32.totalorder %s146, %s147
      %p156 = scmp.eq.s32.totalorder %s28, 0
      %p157 = por %p155, %p156
      %p158 = scmp.ne.s32.totalorder %s146, %s147
      %p159 = scmp.eq.s32.totalorder %s29, 1
      %p160 = por %p158, %p159
      %p162 = scmp.ne.s32.totalorder %s147, %s161
      %p163 = scmp.eq.s32.totalorder %s29, 0
      %p164 = por %p162, %p163
      %s166 = sadd.s32 %s165, 1
      %p169 = scmp.eq.s32.totalorder %s23, 1
      %p170 = scmp.ne.s32.totalorder %s165, %s167
      %p171 = scmp.eq.s32.totalorder %s23, 0
      %p172 = por %p170, %p171
      %p173 = scmp.ne.s32.totalorder %s165, %s167
      %p174 = scmp.eq.s32.totalorder %s28, 1
      %p175 = por %p173, %p174
      %p176 = scmp.ne.s32.totalorder %s167, %s168
      %p177 = scmp.eq.s32.totalorder %s28, 0
      %p178 = por %p176, %p177
      %p179 = scmp.ne.s32.totalorder %s167, %s168
      %p180 = scmp.eq.s32.totalorder %s29, 1
      %p181 = por %p179, %p180
      %p183 = scmp.ne.s32.totalorder %s168, %s182
      %p184 = scmp.eq.s32.totalorder %s29, 0
      %p185 = por %p183, %p184
      %s187 = sadd.s32 %s186, 1
      %p190 = scmp.eq.s32.totalorder %s23, 1
      %p191 = scmp.ne.s32.totalorder %s186, %s188
      %p192 = scmp.eq.s32.totalorder %s23, 0
      %p193 = por %p191, %p192
      %p194 = scmp.ne.s32.totalorder %s186, %s188
      %p195 = scmp.eq.s32.totalorder %s28, 1
      %p196 = por %p194, %p195
      %p197 = scmp.ne.s32.totalorder %s188, %s189
      %p198 = scmp.eq.s32.totalorder %s28, 0
      %p199 = por %p197, %p198
      %p200 = scmp.ne.s32.totalorder %s188, %s189
      %p201 = scmp.eq.s32.totalorder %s29, 1
      %p202 = por %p200, %p201
      %p204 = scmp.ne.s32.totalorder %s189, %s203
      %p205 = scmp.eq.s32.totalorder %s29, 0
      %p206 = por %p204, %p205
      %s207 = ssub.s32 %s30, %s42
      %s208 = ssub.s32 %s31, %s38
      %s209 = sor.u32 %s207, %s208
      %p210 = scmp.eq.s32.totalorder %s209, 0
      %s212 = sadd.s32 %s211, 1
      %s213 = scalar_select %p210, %s211, %s212
      %p216 = pneg %p210
      %p217 = scmp.eq.s32.totalorder %s23, 1
      %p218 = por %p216, %p217
      %p219 = scmp.ne.s32.totalorder %s211, %s214
      %p220 = scmp.eq.s32.totalorder %s23, 0
      %p221 = por %p219, %p220
      %p222 = scmp.ne.s32.totalorder %s211, %s214
      %p223 = scmp.eq.s32.totalorder %s28, 1
      %p224 = por %p222, %p223
      %p225 = scmp.ne.s32.totalorder %s214, %s215
      %p226 = scmp.eq.s32.totalorder %s28, 0
      %p227 = por %p225, %p226
      %p228 = scmp.ne.s32.totalorder %s214, %s215
      %p229 = scmp.eq.s32.totalorder %s29, 1
      %p230 = por %p228, %p229
      %p232 = scmp.ne.s32.totalorder %s215, %s231
      %p233 = scmp.eq.s32.totalorder %s29, 0
      %p234 = por %p232, %p233
      %p235 = scmp.le.s32.totalorder 1, %s23
      %p236 = scmp.lt.s32.totalorder %s23, 3
      %p237 = pnand %p235, %p236
      %p238 = pneg %p237
      // Predicated region
      $region9: #{tpu_custom_call.1} parent=5 // pred_check
        _
      $region10: #{tpu_custom_call.1} parent=5 // pred_check_branch
        %240 = sbr.rel (%p237) target = $region12
      $region11: #{tpu_custom_call.1} parent=5 // pred_region
        %s241 = ssub.s32 %s23, 1
        // Predicated region
        $region13: #{tpu_custom_call.1} parent=11 // pred_check
          %p242 = pneg %p136
        $region14: #{tpu_custom_call.1} parent=11 // pred_check_branch
          %244 = sbr.rel (%p242) target = $region16
        $region15: #{tpu_custom_call.1} parent=11 // pred_region
          %s246 = ssub.s32 256, 256
          %247 = vsyncadd [#allocation12], %s246
          %s248 = sshll.u32 [#allocation11], 4
          %s249 = int_to_ptr.vmem [resolvable:$true] %s248
          %254 = dma.hbm_to_vmem [thread:$0]  %s3, 256, %s249, [#allocation12], 64, 64, 4
        $region16: #{tpu_custom_call.1} parent=11 // pred_fallthru
          _
        // Predicated region
        $region17: #{tpu_custom_call.1} parent=11 // pred_check
          %p255 = pneg %p157
        $region18: #{tpu_custom_call.1} parent=11 // pred_check_branch
          %257 = sbr.rel (%p255) target = $region20
        $region19: #{tpu_custom_call.1} parent=11 // pred_region
          _
        $region20: #{tpu_custom_call.1} parent=11 // pred_fallthru
          _
        // Predicated region
        $region21: #{tpu_custom_call.1} parent=11 // pred_check
          %p258 = pneg %p178
        $region22: #{tpu_custom_call.1} parent=11 // pred_check_branch
          %260 = sbr.rel (%p258) target = $region24
        $region23: #{tpu_custom_call.1} parent=11 // pred_region
          _
        $region24: #{tpu_custom_call.1} parent=11 // pred_fallthru
          _
        // Predicated region
        $region25: #{tpu_custom_call.1} parent=11 // pred_check
          %p261 = pneg %p199
        $region26: #{tpu_custom_call.1} parent=11 // pred_check_branch
          %263 = sbr.rel (%p261) target = $region28
        $region27: #{tpu_custom_call.1} parent=11 // pred_region
          _
        $region28: #{tpu_custom_call.1} parent=11 // pred_fallthru
          _
      $region12: #{tpu_custom_call.1} parent=5 // pred_fallthru
        _
      %p264 = scmp.lt.s32.totalorder %s23, 2
      // Predicated region
      $region29: #{tpu_custom_call.1} parent=5 // pred_check
        %p265 = pneg %p264
      $region30: #{tpu_custom_call.1} parent=5 // pred_check_branch
        %267 = sbr.rel (%p265) target = $region32
      $region31: #{tpu_custom_call.1} parent=5 // pred_region
        // Predicated region
        $region33: #{tpu_custom_call.1} parent=31 // pred_check
          %p268 = pneg %p57
        $region34: #{tpu_custom_call.1} parent=31 // pred_check_branch
          %270 = sbr.rel (%p268) target = $region36
        $region35: #{tpu_custom_call.1} parent=31 // pred_region
          %s271 = sand.u32 %s47, 1
          %s272 = scalar_lea.sflag [#allocation6], %s271
          %s273 = sand.u32 %s47, 1
          %s274 = smul.addr %s273, 4
          %s275 = scalar_lea.vmem [#allocation5], %s274
          %s277 = ssub.s32 64, 64
          %278 = vsyncadd %s272, %s277
          %s279 = sadd.s32 %s31, %s30
          %s280 = smul.addr %s279, 64
          %s281 = scalar_lea.hbm %s0, %s280
          %s283 = sshll.u32 %s275, 4
          %s284 = int_to_ptr.vmem [resolvable:$true] %s283
          %286 = dma.hbm_to_vmem [thread:$0]  %s281, 64, %s284, %s272
        $region36: #{tpu_custom_call.1} parent=31 // pred_fallthru
          _
        // Predicated region
        $region37: #{tpu_custom_call.1} parent=31 // pred_check
          %p287 = pneg %p83
        $region38: #{tpu_custom_call.1} parent=31 // pred_check_branch
          %289 = sbr.rel (%p287) target = $region40
        $region39: #{tpu_custom_call.1} parent=31 // pred_region
          %s290 = sand.u32 %s23, 1
          %s291 = scalar_lea.sflag [#allocation9], %s290
          %s292 = sand.u32 %s73, 1
          %s293 = smul.addr %s292, 4
          %s294 = scalar_lea.vmem [#allocation8], %s293
          %s296 = ssub.s32 64, 64
          %297 = vsyncadd %s291, %s296
          %s298 = smul.addr %s30, 64
          %s299 = scalar_lea.hbm %s1, %s298
          %s301 = sshll.u32 %s294, 4
          %s302 = int_to_ptr.vmem [resolvable:$true] %s301
          %304 = dma.hbm_to_vmem [thread:$0]  %s299, 64, %s302, %s291
        $region40: #{tpu_custom_call.1} parent=31 // pred_fallthru
          _
        // Predicated region
        $region41: #{tpu_custom_call.1} parent=31 // pred_check
          %p305 = pneg %p109
        $region42: #{tpu_custom_call.1} parent=31 // pred_check_branch
          %307 = sbr.rel (%p305) target = $region44
        $region43: #{tpu_custom_call.1} parent=31 // pred_region
          %s308 = sand.u32 %s23, 1
          %s309 = scalar_lea.sflag [#allocation9], %s308
          %s310 = sand.u32 %s99, 1
          %s311 = smul.addr %s310, 4
          %s312 = scalar_lea.vmem [#allocation10], %s311
          %s314 = ssub.s32 64, 64
          %315 = vsyncadd %s309, %s314
          %s316 = smul.addr %s30, 64
          %s317 = scalar_lea.hbm %s2, %s316
          %s319 = sshll.u32 %s312, 4
          %s320 = int_to_ptr.vmem [resolvable:$true] %s319
          %322 = dma.hbm_to_vmem [thread:$0]  %s317, 64, %s320, %s309
        $region44: #{tpu_custom_call.1} parent=31 // pred_fallthru
          _
      $region32: #{tpu_custom_call.1} parent=5 // pred_fallthru
        _
      %p323 = scmp.le.s32.totalorder 1, %s23
      %p324 = scmp.lt.s32.totalorder %s23, 3
      %p325 = pnand %p323, %p324
      %p326 = pneg %p325
      // Predicated region
      $region45: #{tpu_custom_call.1} parent=5 // pred_check
        _
      $region46: #{tpu_custom_call.1} parent=5 // pred_check_branch
        %328 = sbr.rel (%p325) target = $region48
      $region47: #{tpu_custom_call.1} parent=5 // pred_region
        %s329 = ssub.s32 %s23, 1
        %s330 = sand.u32 %s50, 1
        %s331 = scalar_lea.sflag [#allocation6], %s330
        %s332 = sand.u32 %s50, 1
        %s333 = smul.addr %s332, 4
        %s334 = scalar_lea.vmem [#allocation5], %s333
        // Predicated region
        $region49: #{tpu_custom_call.1} parent=47 // pred_check
          %p335 = pneg %p63
        $region50: #{tpu_custom_call.1} parent=47 // pred_check_branch
          %337 = sbr.rel (%p335) target = $region52
        $region51: #{tpu_custom_call.1} parent=47 // pred_region
          %338 = dma.done %s331, 64
        $region52: #{tpu_custom_call.1} parent=47 // pred_fallthru
          _
        %s339 = sand.u32 %s28, 1
        %s340 = scalar_lea.sflag [#allocation9], %s339
        %s341 = sand.u32 %s76, 1
        %s342 = smul.addr %s341, 4
        %s343 = scalar_lea.vmem [#allocation8], %s342
        // Predicated region
        $region53: #{tpu_custom_call.1} parent=47 // pred_check
          %p344 = pneg %p89
        $region54: #{tpu_custom_call.1} parent=47 // pred_check_branch
          %346 = sbr.rel (%p344) target = $region56
        $region55: #{tpu_custom_call.1} parent=47 // pred_region
          %347 = dma.done %s340, 64
        $region56: #{tpu_custom_call.1} parent=47 // pred_fallthru
          _
        %s348 = sand.u32 %s28, 1
        %s349 = scalar_lea.sflag [#allocation9], %s348
        %s350 = sand.u32 %s102, 1
        %s351 = smul.addr %s350, 4
        %s352 = scalar_lea.vmem [#allocation10], %s351
        // Predicated region
        $region57: #{tpu_custom_call.1} parent=47 // pred_check
          %p353 = pneg %p115
        $region58: #{tpu_custom_call.1} parent=47 // pred_check_branch
          %355 = sbr.rel (%p353) target = $region60
        $region59: #{tpu_custom_call.1} parent=47 // pred_region
          %356 = dma.done %s349, 64
        $region60: #{tpu_custom_call.1} parent=47 // pred_fallthru
          _
        // Predicated region
        $region61: #{tpu_custom_call.1} parent=47 // pred_check
          %p357 = pneg %p136
        $region62: #{tpu_custom_call.1} parent=47 // pred_check_branch
          %359 = sbr.rel (%p357) target = $region64
        $region63: #{tpu_custom_call.1} parent=47 // pred_region
          %360 = dma.done [#allocation12], 256
        $region64: #{tpu_custom_call.1} parent=47 // pred_fallthru
          _
        %s361 = sand.u32 %s50, 1
        %s362 = scalar_lea.sflag [#allocation6], %s361
        %s363 = sand.u32 %s50, 1
        %s364 = smul.addr %s363, 4
        %s365 = scalar_lea.vmem [#allocation5], %s364
        %p366 = pneg %p63
        %p367 = pneg %p60
        %s368 = sand.u32 %s28, 1
        %s369 = scalar_lea.sflag [#allocation9], %s368
        %s370 = sand.u32 %s76, 1
        %s371 = smul.addr %s370, 4
        %s372 = scalar_lea.vmem [#allocation8], %s371
        %p373 = pneg %p89
        %p374 = pneg %p86
        %s375 = sand.u32 %s28, 1
        %s376 = scalar_lea.sflag [#allocation9], %s375
        %s377 = sand.u32 %s102, 1
        %s378 = smul.addr %s377, 4
        %s379 = scalar_lea.vmem [#allocation10], %s378
        %p380 = pneg %p115
        %p381 = pneg %p112
        %p382 = pneg %p136
        %p383 = pneg %p133
        %p384 = pneg %p157
        %p385 = pneg %p154
        %p386 = pneg %p178
        %p387 = pneg %p175
        %p388 = pneg %p199
        %p389 = pneg %p196
        %p390 = pneg %p227
        %p391 = pneg %p224
        %s392 = sand.u32 %s214, 1
        %s393 = scalar_lea.sflag [#allocation7], %s392
        %s394 = sand.u32 %s214, 1
        %s395 = smul.addr %s394, 8
        %s396 = scalar_lea.vmem [#allocation13], %s395
        %p398 = scmp.eq.s32.totalorder %s33, 0
        // Predicated region
        $region65: #{tpu_custom_call.1} parent=47 // pred_check
          %p399 = pneg %p398
        $region66: #{tpu_custom_call.1} parent=47 // pred_check_branch
          %401 = sbr.rel (%p399) target = $region68
        $region67: #{tpu_custom_call.1} parent=47 // pred_region
          %v402 = vld [vmem:[%s343] sm:$0xf]
          %v403 = vld [vmem:[#allocation11] sm:$0xf]
          %v404 = vld [vmem:[#allocation11 + $0x4] sm:$0xf]
          %v405 = vld [vmem:[#allocation11 + $0x8] sm:$0xf]
          %v406 = vld [vmem:[#allocation11 + $0xc] sm:$0xf]
          %v407 = vld [vmem:[%s4] sm:$0x1]
          %v409 = vlaneseq
          %v410 = vshrl.u32 %v409, 7
          %v411 = vsub.s32 0, %v410
          %v412 = vrot.slane %v407, %v411
          %v417 = vunpack.c.l.b16 %v403
          %v418 = vunpack.c.l.b16 %v404
          %v419 = vunpack.c.l.b16 %v405
          %v420 = vunpack.c.l.b16 %v406
          %v421 = vpack.c.b16 %v418, %v417
          %v422 = vpack.c.b16 %v420, %v419
          %423 = vrot.lane.b32.xlu0 %v421, 96
          %v424 = vpop.permute.xlu0 %423
          %425 = vrot.lane.b32.xlu0 %v422, 96
          %v426 = vpop.permute.xlu0 %425
          %429 = vrot.lane.b32.xlu0 %v412, 96
          %v430 = vpop.permute.xlu0 %429
          %vm432 = vcmask 261120
          %v434 = vsel %vm432, %v402, 0
          %436 = vmatprep.subr.bf16.mxu0 0
          %437 = vmatpush1.bf16.msra.mxu0 %v424
          %438 = vmatprep.subr.bf16.mxu0 0
          %439 = vmatpush1.bf16.msra.mxu0 %v426
          %440 = vmatprep.subr.bf16.mxu0 0
          %441 = vmatpush1.bf16.msra.mxu0 0
          %442 = vmatprep.subr.bf16.mxu0 0
          %443 = vmatpush1.bf16.msra.mxu0 0
          %444 = vmatprep.subr.bf16.mxu0 0
          %445 = vmatpush1.bf16.msra.mxu0 0
          %446 = vmatprep.subr.bf16.mxu0 0
          %447 = vmatpush1.bf16.msra.mxu0 0
          %448 = vmatprep.subr.bf16.mxu0 0
          %449 = vmatpush1.bf16.msra.mxu0 0
          %450 = vmatprep.subr.bf16.mxu0 0
          %451 = vmatpush1.bf16.msra.mxu0 0
          %452 = vmatprep.subr.bf16.mxu0 0
          %453 = vmatpush1.bf16.msra.mxu0 0
          %454 = vmatprep.subr.bf16.mxu0 0
          %455 = vmatpush1.bf16.msra.mxu0 0
          %456 = vmatprep.subr.bf16.mxu0 0
          %457 = vmatpush1.bf16.msra.mxu0 0
          %458 = vmatprep.subr.bf16.mxu0 0
          %459 = vmatpush1.bf16.msra.mxu0 0
          %460 = vmatprep.subr.bf16.mxu0 0
          %461 = vmatpush1.bf16.msra.mxu0 0
          %462 = vmatprep.subr.bf16.mxu0 0
          %463 = vmatpush1.bf16.msra.mxu0 0
          %464 = vmatprep.subr.bf16.mxu0 0
          %465 = vmatpush1.bf16.msra.mxu0 0
          %466 = vmatprep.subr.bf16.mxu0 0
          %467 = vmatpush1.bf16.msra.mxu0 0
          %468 = vmatprep.mubr.bf16.mxu0 0
          %469 = vmatmul.mubr.bf16.gmra.mrb[0].mxu0 %v434
          %v470 = vpop.f32.mrb[0].mxu0
          %v471 = vadd.f32 %v430, %v470
          %v472 = vpop.f32.mrb[0].mxu0
          %v473 = vpop.f32.mrb[0].mxu0
          %v474 = vpop.f32.mrb[0].mxu0
          %475 = vdwg.mxu0
          %v476 = vld [vmem:[%s352] sm:$0xf]
          %477 = vrot.lane.b32.xlu0 %v421, 64
          %v478 = vpop.permute.xlu0 %477
          %479 = vrot.lane.b32.xlu0 %v422, 64
          %v480 = vpop.permute.xlu0 %479
          %483 = vrot.lane.b32.xlu0 %v412, 64
          %v484 = vpop.permute.xlu0 %483
          %v487 = vsel %vm432, %v476, 0
          %489 = vmatprep.subr.bf16.mxu0 0
          %490 = vmatpush1.bf16.msra.mxu0 %v478
          %491 = vmatprep.subr.bf16.mxu0 0
          %492 = vmatpush1.bf16.msra.mxu0 %v480
          %493 = vmatprep.subr.bf16.mxu0 0
          %494 = vmatpush1.bf16.msra.mxu0 0
          %495 = vmatprep.subr.bf16.mxu0 0
          %496 = vmatpush1.bf16.msra.mxu0 0
          %497 = vmatprep.subr.bf16.mxu0 0
          %498 = vmatpush1.bf16.msra.mxu0 0
          %499 = vmatprep.subr.bf16.mxu0 0
          %500 = vmatpush1.bf16.msra.mxu0 0
          %501 = vmatprep.subr.bf16.mxu0 0
          %502 = vmatpush1.bf16.msra.mxu0 0
          %503 = vmatprep.subr.bf16.mxu0 0
          %504 = vmatpush1.bf16.msra.mxu0 0
          %505 = vmatprep.subr.bf16.mxu0 0
          %506 = vmatpush1.bf16.msra.mxu0 0
          %507 = vmatprep.subr.bf16.mxu0 0
          %508 = vmatpush1.bf16.msra.mxu0 0
          %509 = vmatprep.subr.bf16.mxu0 0
          %510 = vmatpush1.bf16.msra.mxu0 0
          %511 = vmatprep.subr.bf16.mxu0 0
          %512 = vmatpush1.bf16.msra.mxu0 0
          %513 = vmatprep.subr.bf16.mxu0 0
          %514 = vmatpush1.bf16.msra.mxu0 0
          %515 = vmatprep.subr.bf16.mxu0 0
          %516 = vmatpush1.bf16.msra.mxu0 0
          %517 = vmatprep.subr.bf16.mxu0 0
          %518 = vmatpush1.bf16.msra.mxu0 0
          %519 = vmatprep.subr.bf16.mxu0 0
          %520 = vmatpush1.bf16.msra.mxu0 0
          %521 = vmatprep.mubr.bf16.mxu0 0
          %522 = vmatmul.mubr.bf16.gmra.mrb[0].mxu0 %v487
          %v523 = vpop.f32.mrb[0].mxu0
          %v524 = vadd.f32 %v484, %v523
          %v525 = vpop.f32.mrb[0].mxu0
          %v526 = vpop.f32.mrb[0].mxu0
          %v527 = vpop.f32.mrb[0].mxu0
          %528 = vdwg.mxu0
          %v529 = vpack.c.bf16 %v471, %v471
          %vm530 = vcmask 257024
          %531 = vst.msk [vmem:[#allocation2] sm:$0xf] %vm530, %v529
          %v532 = vpack.c.bf16 %v524, %v524
          %533 = vst.msk [vmem:[#allocation3] sm:$0xf] %vm530, %v532
        $region68: #{tpu_custom_call.1} parent=47 // pred_fallthru
          _
        %v534 = vld [vmem:[%s334] sm:$0xf]
        %v535 = vld [vmem:[#allocation11] sm:$0xf]
        %v536 = vld [vmem:[#allocation11 + $0x4] sm:$0xf]
        %v537 = vld [vmem:[#allocation11 + $0x8] sm:$0xf]
        %v538 = vld [vmem:[#allocation11 + $0xc] sm:$0xf]
        %v539 = vld [vmem:[%s4] sm:$0x1]
        %v541 = vlaneseq
        %v542 = vshrl.u32 %v541, 7
        %v543 = vsub.s32 0, %v542
        %v544 = vrot.slane %v539, %v543
        %v550 = vunpack.c.l.b16 %v535
        %v551 = vunpack.c.l.b16 %v536
        %v552 = vunpack.c.l.b16 %v537
        %v553 = vunpack.c.l.b16 %v538
        %v554 = vpack.c.b16 %v551, %v550
        %v555 = vpack.c.b16 %v553, %v552
        %vm558 = vcmask 261120
        %v560 = vsel %vm558, %v534, 0
        %562 = vmatprep.subr.bf16.mxu0 0
        %563 = vmatpush1.bf16.msra.mxu0 %v554
        %564 = vmatprep.subr.bf16.mxu0 0
        %565 = vmatpush1.bf16.msra.mxu0 %v555
        %566 = vmatprep.subr.bf16.mxu0 0
        %567 = vmatpush1.bf16.msra.mxu0 0
        %568 = vmatprep.subr.bf16.mxu0 0
        %569 = vmatpush1.bf16.msra.mxu0 0
        %570 = vmatprep.subr.bf16.mxu0 0
        %571 = vmatpush1.bf16.msra.mxu0 0
        %572 = vmatprep.subr.bf16.mxu0 0
        %573 = vmatpush1.bf16.msra.mxu0 0
        %574 = vmatprep.subr.bf16.mxu0 0
        %575 = vmatpush1.bf16.msra.mxu0 0
        %576 = vmatprep.subr.bf16.mxu0 0
        %577 = vmatpush1.bf16.msra.mxu0 0
        %578 = vmatprep.subr.bf16.mxu0 0
        %579 = vmatpush1.bf16.msra.mxu0 0
        %580 = vmatprep.subr.bf16.mxu0 0
        %581 = vmatpush1.bf16.msra.mxu0 0
        %582 = vmatprep.subr.bf16.mxu0 0
        %583 = vmatpush1.bf16.msra.mxu0 0
        %584 = vmatprep.subr.bf16.mxu0 0
        %585 = vmatpush1.bf16.msra.mxu0 0
        %586 = vmatprep.subr.bf16.mxu0 0
        %587 = vmatpush1.bf16.msra.mxu0 0
        %588 = vmatprep.subr.bf16.mxu0 0
        %589 = vmatpush1.bf16.msra.mxu0 0
        %590 = vmatprep.subr.bf16.mxu0 0
        %591 = vmatpush1.bf16.msra.mxu0 0
        %592 = vmatprep.subr.bf16.mxu0 0
        %593 = vmatpush1.bf16.msra.mxu0 0
        %594 = vmatprep.mubr.bf16.mxu0 0
        %595 = vmatmul.mubr.bf16.gmra.mrb[0].mxu0 %v560
        %v596 = vpop.f32.mrb[0].mxu0
        %v597 = vadd.f32 %v544, %v596
        %v598 = vpop.f32.mrb[0].mxu0
        %v599 = vpop.f32.mrb[0].mxu0
        %v600 = vpop.f32.mrb[0].mxu0
        %601 = vdwg.mxu0
        %v602 = vpack.c.bf16 %v597, %v597
        %v603 = vld [vmem:[#allocation2] sm:$0xf]
        %v604 = vld [vmem:[#allocation3] sm:$0xf]
        %vm605 = vcmask 64512
        %v607 = vsel %vm605, %v602, 0
        %v610 = vsel %vm605, %v603, 0
        %612 = vmatprep.subr.bf16.mxu0 0
        %613 = vmatpush1.bf16.xpose.msra.mxu0 %v610
        %614 = vmatprep.subr.bf16.mxu0 0
        %615 = vmatpush1.bf16.xpose.msra.mxu0 0
        %616 = vmatprep.subr.bf16.mxu0 0
        %617 = vmatpush1.bf16.xpose.msra.mxu0 0
        %618 = vmatprep.subr.bf16.mxu0 0
        %619 = vmatpush1.bf16.xpose.msra.mxu0 0
        %620 = vmatprep.subr.bf16.mxu0 0
        %621 = vmatpush1.bf16.xpose.msra.mxu0 0
        %622 = vmatprep.subr.bf16.mxu0 0
        %623 = vmatpush1.bf16.xpose.msra.mxu0 0
        %624 = vmatprep.subr.bf16.mxu0 0
        %625 = vmatpush1.bf16.xpose.msra.mxu0 0
        %626 = vmatprep.subr.bf16.mxu0 0
        %627 = vmatpush1.bf16.xpose.msra.mxu0 0
        %628 = vmatprep.subr.bf16.mxu0 0
        %629 = vmatpush1.bf16.xpose.msra.mxu0 0
        %630 = vmatprep.subr.bf16.mxu0 0
        %631 = vmatpush1.bf16.xpose.msra.mxu0 0
        %632 = vmatprep.subr.bf16.mxu0 0
        %633 = vmatpush1.bf16.xpose.msra.mxu0 0
        %634 = vmatprep.subr.bf16.mxu0 0
        %635 = vmatpush1.bf16.xpose.msra.mxu0 0
        %636 = vmatprep.subr.bf16.mxu0 0
        %637 = vmatpush1.bf16.xpose.msra.mxu0 0
        %638 = vmatprep.subr.bf16.mxu0 0
        %639 = vmatpush1.bf16.xpose.msra.mxu0 0
        %640 = vmatprep.subr.bf16.mxu0 0
        %641 = vmatpush1.bf16.xpose.msra.mxu0 0
        %642 = vmatprep.subr.bf16.mxu0 0
        %643 = vmatpush1.bf16.xpose.msra.mxu0 0
        %644 = vmatprep.mubr.bf16.mxu0 0
        %645 = vmatmul.mubr.bf16.gmra.mrb[0].mxu0 %v607
        %v646 = vpop.f32.mrb[0].mxu0
        %v647 = vadd.f32 0.0, %v646
        %v648 = vpop.f32.mrb[0].mxu0
        %v649 = vpop.f32.mrb[0].mxu0
        %v650 = vpop.f32.mrb[0].mxu0
        %651 = vdwg.mxu0
        %v652 = vsel %vm605, %v647, -inf
        %653 = vmax.xlane.f32.xlu0 %v652
        %v654 = vpop.xlane.xlu0 %653
        %v655 = vsub.f32 %v647, %v654
        %v656 = vmul.f32 %v655, 1.442695
        %v657 = vpow.pop %v656
        %v658 = vsel %vm605, %v657, 0.0
        %659 = vadd.xlane.f32.xlu0 %v658
        %v660 = vpop.xlane.xlu0 %659
        %v661 = vpack.c.bf16 %v657, %v657
        %v663 = vsel %vm605, %v661, 0
        %vm665 = vcmask 1043456
        %v667 = vsel %vm665, %v604, 0
        %669 = vmatprep.subr.bf16.mxu0 0
        %670 = vmatpush1.bf16.msra.mxu0 %v667
        %671 = vmatprep.subr.bf16.mxu0 0
        %672 = vmatpush1.bf16.msra.mxu0 0
        %673 = vmatprep.subr.bf16.mxu0 0
        %674 = vmatpush1.bf16.msra.mxu0 0
        %675 = vmatprep.subr.bf16.mxu0 0
        %676 = vmatpush1.bf16.msra.mxu0 0
        %677 = vmatprep.subr.bf16.mxu0 0
        %678 = vmatpush1.bf16.msra.mxu0 0
        %679 = vmatprep.subr.bf16.mxu0 0
        %680 = vmatpush1.bf16.msra.mxu0 0
        %681 = vmatprep.subr.bf16.mxu0 0
        %682 = vmatpush1.bf16.msra.mxu0 0
        %683 = vmatprep.subr.bf16.mxu0 0
        %684 = vmatpush1.bf16.msra.mxu0 0
        %685 = vmatprep.subr.bf16.mxu0 0
        %686 = vmatpush1.bf16.msra.mxu0 0
        %687 = vmatprep.subr.bf16.mxu0 0
        %688 = vmatpush1.bf16.msra.mxu0 0
        %689 = vmatprep.subr.bf16.mxu0 0
        %690 = vmatpush1.bf16.msra.mxu0 0
        %691 = vmatprep.subr.bf16.mxu0 0
        %692 = vmatpush1.bf16.msra.mxu0 0
        %693 = vmatprep.subr.bf16.mxu0 0
        %694 = vmatpush1.bf16.msra.mxu0 0
        %695 = vmatprep.subr.bf16.mxu0 0
        %696 = vmatpush1.bf16.msra.mxu0 0
        %697 = vmatprep.subr.bf16.mxu0 0
        %698 = vmatpush1.bf16.msra.mxu0 0
        %699 = vmatprep.subr.bf16.mxu0 0
        %700 = vmatpush1.bf16.msra.mxu0 0
        %701 = vmatprep.mubr.bf16.mxu0 0
        %702 = vmatmul.mubr.bf16.gmra.mrb[0].mxu0 %v663
        %v703 = vpop.f32.mrb[0].mxu0
        %v704 = vadd.f32 0.0, %v703
        %v705 = vpop.f32.mrb[0].mxu0
        %v706 = vpop.f32.mrb[0].mxu0
        %v707 = vpop.f32.mrb[0].mxu0
        %708 = vdwg.mxu0
        %v709 = vrcp.pop %v660
        %v710 = vmul.f32 %v704, %v709
        %711 = vst.msk [vmem:[#allocation4] sm:$0xff] %vm605, %v710
        %v712 = vld [vmem:[#allocation2] sm:$0xf]
        %v713 = vld [vmem:[#allocation3] sm:$0xf]
        %715 = vrot.lane.b32.xlu0 %v602, 120
        %v716 = vpop.permute.xlu0 %715
        %v718 = vunpack.c.l.b16 %v712
        %v719 = vpack.c.b16 %v718, %v718
        %720 = vrot.lane.b32.xlu0 %v719, 120
        %v721 = vpop.permute.xlu0 %720
        %v723 = vsel %vm605, %v716, 0
        %v726 = vsel %vm605, %v721, 0
        %728 = vmatprep.subr.bf16.mxu0 0
        %729 = vmatpush1.bf16.xpose.msra.mxu0 %v726
        %730 = vmatprep.subr.bf16.mxu0 0
        %731 = vmatpush1.bf16.xpose.msra.mxu0 0
        %732 = vmatprep.subr.bf16.mxu0 0
        %733 = vmatpush1.bf16.xpose.msra.mxu0 0
        %734 = vmatprep.subr.bf16.mxu0 0
        %735 = vmatpush1.bf16.xpose.msra.mxu0 0
        %736 = vmatprep.subr.bf16.mxu0 0
        %737 = vmatpush1.bf16.xpose.msra.mxu0 0
        %738 = vmatprep.subr.bf16.mxu0 0
        %739 = vmatpush1.bf16.xpose.msra.mxu0 0
        %740 = vmatprep.subr.bf16.mxu0 0
        %741 = vmatpush1.bf16.xpose.msra.mxu0 0
        %742 = vmatprep.subr.bf16.mxu0 0
        %743 = vmatpush1.bf16.xpose.msra.mxu0 0
        %744 = vmatprep.subr.bf16.mxu0 0
        %745 = vmatpush1.bf16.xpose.msra.mxu0 0
        %746 = vmatprep.subr.bf16.mxu0 0
        %747 = vmatpush1.bf16.xpose.msra.mxu0 0
        %748 = vmatprep.subr.bf16.mxu0 0
        %749 = vmatpush1.bf16.xpose.msra.mxu0 0
        %750 = vmatprep.subr.bf16.mxu0 0
        %751 = vmatpush1.bf16.xpose.msra.mxu0 0
        %752 = vmatprep.subr.bf16.mxu0 0
        %753 = vmatpush1.bf16.xpose.msra.mxu0 0
        %754 = vmatprep.subr.bf16.mxu0 0
        %755 = vmatpush1.bf16.xpose.msra.mxu0 0
        %756 = vmatprep.subr.bf16.mxu0 0
        %757 = vmatpush1.bf16.xpose.msra.mxu0 0
        %758 = vmatprep.subr.bf16.mxu0 0
        %759 = vmatpush1.bf16.xpose.msra.mxu0 0
        %760 = vmatprep.mubr.bf16.mxu0 0
        %761 = vmatmul.mubr.bf16.gmra.mrb[0].mxu0 %v723
        %v762 = vpop.f32.mrb[0].mxu0
        %v763 = vadd.f32 0.0, %v762
        %v764 = vpop.f32.mrb[0].mxu0
        %v765 = vpop.f32.mrb[0].mxu0
        %v766 = vpop.f32.mrb[0].mxu0
        %767 = vdwg.mxu0
        %v768 = vsel %vm605, %v763, -inf
        %769 = vmax.xlane.f32.xlu0 %v768
        %v770 = vpop.xlane.xlu0 %769
        %v771 = vsub.f32 %v763, %v770
        %v772 = vmul.f32 %v771, 1.442695
        %v773 = vpow.pop %v772
        %v774 = vsel %vm605, %v773, 0.0
        %775 = vadd.xlane.f32.xlu0 %v774
        %v776 = vpop.xlane.xlu0 %775
        %v777 = vpack.c.bf16 %v773, %v773
        %v779 = vunpack.c.l.b16 %v713
        %v780 = vpack.c.b16 %v779, %v779
        %781 = vrot.lane.b32.xlu0 %v780, 120
        %v782 = vpop.permute.xlu0 %781
        %v784 = vsel %vm605, %v777, 0
        %v787 = vsel %vm665, %v782, 0
        %789 = vmatprep.subr.bf16.mxu0 0
        %790 = vmatpush1.bf16.msra.mxu0 %v787
        %791 = vmatprep.subr.bf16.mxu0 0
        %792 = vmatpush1.bf16.msra.mxu0 0
        %793 = vmatprep.subr.bf16.mxu0 0
        %794 = vmatpush1.bf16.msra.mxu0 0
        %795 = vmatprep.subr.bf16.mxu0 0
        %796 = vmatpush1.bf16.msra.mxu0 0
        %797 = vmatprep.subr.bf16.mxu0 0
        %798 = vmatpush1.bf16.msra.mxu0 0
        %799 = vmatprep.subr.bf16.mxu0 0
        %800 = vmatpush1.bf16.msra.mxu0 0
        %801 = vmatprep.subr.bf16.mxu0 0
        %802 = vmatpush1.bf16.msra.mxu0 0
        %803 = vmatprep.subr.bf16.mxu0 0
        %804 = vmatpush1.bf16.msra.mxu0 0
        %805 = vmatprep.subr.bf16.mxu0 0
        %806 = vmatpush1.bf16.msra.mxu0 0
        %807 = vmatprep.subr.bf16.mxu0 0
        %808 = vmatpush1.bf16.msra.mxu0 0
        %809 = vmatprep.subr.bf16.mxu0 0
        %810 = vmatpush1.bf16.msra.mxu0 0
        %811 = vmatprep.subr.bf16.mxu0 0
        %812 = vmatpush1.bf16.msra.mxu0 0
        %813 = vmatprep.subr.bf16.mxu0 0
        %814 = vmatpush1.bf16.msra.mxu0 0
        %815 = vmatprep.subr.bf16.mxu0 0
        %816 = vmatpush1.bf16.msra.mxu0 0
        %817 = vmatprep.subr.bf16.mxu0 0
        %818 = vmatpush1.bf16.msra.mxu0 0
        %819 = vmatprep.subr.bf16.mxu0 0
        %820 = vmatpush1.bf16.msra.mxu0 0
        %821 = vmatprep.mubr.bf16.mxu0 0
        %822 = vmatmul.mubr.bf16.gmra.mrb[0].mxu0 %v784
        %v823 = vpop.f32.mrb[0].mxu0
        %v824 = vadd.f32 0.0, %v823
        %v825 = vpop.f32.mrb[0].mxu0
        %v826 = vpop.f32.mrb[0].mxu0
        %v827 = vpop.f32.mrb[0].mxu0
        %828 = vdwg.mxu0
        %v829 = vrcp.pop %v776
        %v830 = vmul.f32 %v824, %v829
        %832 = vrot.lane.b32.xlu0 %v830, 8
        %v833 = vpop.permute.xlu0 %832
        %vm835 = vcmask 130112
        %836 = vst.msk [vmem:[#allocation4] sm:$0xff] %vm835, %v833
        %v837 = vld [vmem:[#allocation2] sm:$0xf]
        %v838 = vld [vmem:[#allocation3] sm:$0xf]
        %839 = vrot.lane.b32.xlu0 %v602, 112
        %v840 = vpop.permute.xlu0 %839
        %v842 = vunpack.c.l.b16 %v837
        %v843 = vpack.c.b16 %v842, %v842
        %844 = vrot.lane.b32.xlu0 %v843, 112
        %v845 = vpop.permute.xlu0 %844
        %v847 = vsel %vm605, %v840, 0
        %v850 = vsel %vm605, %v845, 0
        %852 = vmatprep.subr.bf16.mxu0 0
        %853 = vmatpush1.bf16.xpose.msra.mxu0 %v850
        %854 = vmatprep.subr.bf16.mxu0 0
        %855 = vmatpush1.bf16.xpose.msra.mxu0 0
        %856 = vmatprep.subr.bf16.mxu0 0
        %857 = vmatpush1.bf16.xpose.msra.mxu0 0
        %858 = vmatprep.subr.bf16.mxu0 0
        %859 = vmatpush1.bf16.xpose.msra.mxu0 0
        %860 = vmatprep.subr.bf16.mxu0 0
        %861 = vmatpush1.bf16.xpose.msra.mxu0 0
        %862 = vmatprep.subr.bf16.mxu0 0
        %863 = vmatpush1.bf16.xpose.msra.mxu0 0
        %864 = vmatprep.subr.bf16.mxu0 0
        %865 = vmatpush1.bf16.xpose.msra.mxu0 0
        %866 = vmatprep.subr.bf16.mxu0 0
        %867 = vmatpush1.bf16.xpose.msra.mxu0 0
        %868 = vmatprep.subr.bf16.mxu0 0
        %869 = vmatpush1.bf16.xpose.msra.mxu0 0
        %870 = vmatprep.subr.bf16.mxu0 0
        %871 = vmatpush1.bf16.xpose.msra.mxu0 0
        %872 = vmatprep.subr.bf16.mxu0 0
        %873 = vmatpush1.bf16.xpose.msra.mxu0 0
        %874 = vmatprep.subr.bf16.mxu0 0
        %875 = vmatpush1.bf16.xpose.msra.mxu0 0
        %876 = vmatprep.subr.bf16.mxu0 0
        %877 = vmatpush1.bf16.xpose.msra.mxu0 0
        %878 = vmatprep.subr.bf16.mxu0 0
        %879 = vmatpush1.bf16.xpose.msra.mxu0 0
        %880 = vmatprep.subr.bf16.mxu0 0
        %881 = vmatpush1.bf16.xpose.msra.mxu0 0
        %882 = vmatprep.subr.bf16.mxu0 0
        %883 = vmatpush1.bf16.xpose.msra.mxu0 0
        %884 = vmatprep.mubr.bf16.mxu0 0
        %885 = vmatmul.mubr.bf16.gmra.mrb[0].mxu0 %v847
        %v886 = vpop.f32.mrb[0].mxu0
        %v887 = vadd.f32 0.0, %v886
        %v888 = vpop.f32.mrb[0].mxu0
        %v889 = vpop.f32.mrb[0].mxu0
        %v890 = vpop.f32.mrb[0].mxu0
        %891 = vdwg.mxu0
        %v892 = vsel %vm605, %v887, -inf
        %893 = vmax.xlane.f32.xlu0 %v892
        %v894 = vpop.xlane.xlu0 %893
        %v895 = vsub.f32 %v887, %v894
        %v896 = vmul.f32 %v895, 1.442695
        %v897 = vpow.pop %v896
        %v898 = vsel %vm605, %v897, 0.0
        %899 = vadd.xlane.f32.xlu0 %v898
        %v900 = vpop.xlane.xlu0 %899
        %v901 = vpack.c.bf16 %v897, %v897
        %v903 = vunpack.c.l.b16 %v838
        %v904 = vpack.c.b16 %v903, %v903
        %905 = vrot.lane.b32.xlu0 %v904, 112
        %v906 = vpop.permute.xlu0 %905
        %v908 = vsel %vm605, %v901, 0
        %v911 = vsel %vm665, %v906, 0
        %913 = vmatprep.subr.bf16.mxu0 0
        %914 = vmatpush1.bf16.msra.mxu0 %v911
        %915 = vmatprep.subr.bf16.mxu0 0
        %916 = vmatpush1.bf16.msra.mxu0 0
        %917 = vmatprep.subr.bf16.mxu0 0
        %918 = vmatpush1.bf16.msra.mxu0 0
        %919 = vmatprep.subr.bf16.mxu0 0
        %920 = vmatpush1.bf16.msra.mxu0 0
        %921 = vmatprep.subr.bf16.mxu0 0
        %922 = vmatpush1.bf16.msra.mxu0 0
        %923 = vmatprep.subr.bf16.mxu0 0
        %924 = vmatpush1.bf16.msra.mxu0 0
        %925 = vmatprep.subr.bf16.mxu0 0
        %926 = vmatpush1.bf16.msra.mxu0 0
        %927 = vmatprep.subr.bf16.mxu0 0
        %928 = vmatpush1.bf16.msra.mxu0 0
        %929 = vmatprep.subr.bf16.mxu0 0
        %930 = vmatpush1.bf16.msra.mxu0 0
        %931 = vmatprep.subr.bf16.mxu0 0
        %932 = vmatpush1.bf16.msra.mxu0 0
        %933 = vmatprep.subr.bf16.mxu0 0
        %934 = vmatpush1.bf16.msra.mxu0 0
        %935 = vmatprep.subr.bf16.mxu0 0
        %936 = vmatpush1.bf16.msra.mxu0 0
        %937 = vmatprep.subr.bf16.mxu0 0
        %938 = vmatpush1.bf16.msra.mxu0 0
        %939 = vmatprep.subr.bf16.mxu0 0
        %940 = vmatpush1.bf16.msra.mxu0 0
        %941 = vmatprep.subr.bf16.mxu0 0
        %942 = vmatpush1.bf16.msra.mxu0 0
        %943 = vmatprep.subr.bf16.mxu0 0
        %944 = vmatpush1.bf16.msra.mxu0 0
        %945 = vmatprep.mubr.bf16.mxu0 0
        %946 = vmatmul.mubr.bf16.gmra.mrb[0].mxu0 %v908
        %v947 = vpop.f32.mrb[0].mxu0
        %v948 = vadd.f32 0.0, %v947
        %v949 = vpop.f32.mrb[0].mxu0
        %v950 = vpop.f32.mrb[0].mxu0
        %v951 = vpop.f32.mrb[0].mxu0
        %952 = vdwg.mxu0
        %v953 = vrcp.pop %v900
        %v954 = vmul.f32 %v948, %v953
        %956 = vrot.lane.b32.xlu0 %v954, 16
        %v957 = vpop.permute.xlu0 %956
        %vm959 = vcmask 195712
        %960 = vst.msk [vmem:[#allocation4] sm:$0xff] %vm959, %v957
        %v961 = vld [vmem:[#allocation2] sm:$0xf]
        %v962 = vld [vmem:[#allocation3] sm:$0xf]
        %963 = vrot.lane.b32.xlu0 %v602, 104
        %v964 = vpop.permute.xlu0 %963
        %v966 = vunpack.c.l.b16 %v961
        %v967 = vpack.c.b16 %v966, %v966
        %968 = vrot.lane.b32.xlu0 %v967, 104
        %v969 = vpop.permute.xlu0 %968
        %v971 = vsel %vm605, %v964, 0
        %v974 = vsel %vm605, %v969, 0
        %976 = vmatprep.subr.bf16.mxu0 0
        %977 = vmatpush1.bf16.xpose.msra.mxu0 %v974
        %978 = vmatprep.subr.bf16.mxu0 0
        %979 = vmatpush1.bf16.xpose.msra.mxu0 0
        %980 = vmatprep.subr.bf16.mxu0 0
        %981 = vmatpush1.bf16.xpose.msra.mxu0 0
        %982 = vmatprep.subr.bf16.mxu0 0
        %983 = vmatpush1.bf16.xpose.msra.mxu0 0
        %984 = vmatprep.subr.bf16.mxu0 0
        %985 = vmatpush1.bf16.xpose.msra.mxu0 0
        %986 = vmatprep.subr.bf16.mxu0 0
        %987 = vmatpush1.bf16.xpose.msra.mxu0 0
        %988 = vmatprep.subr.bf16.mxu0 0
        %989 = vmatpush1.bf16.xpose.msra.mxu0 0
        %990 = vmatprep.subr.bf16.mxu0 0
        %991 = vmatpush1.bf16.xpose.msra.mxu0 0
        %992 = vmatprep.subr.bf16.mxu0 0
        %993 = vmatpush1.bf16.xpose.msra.mxu0 0
        %994 = vmatprep.subr.bf16.mxu0 0
        %995 = vmatpush1.bf16.xpose.msra.mxu0 0
        %996 = vmatprep.subr.bf16.mxu0 0
        %997 = vmatpush1.bf16.xpose.msra.mxu0 0
        %998 = vmatprep.subr.bf16.mxu0 0
        %999 = vmatpush1.bf16.xpose.msra.mxu0 0
        %1000 = vmatprep.subr.bf16.mxu0 0
        %1001 = vmatpush1.bf16.xpose.msra.mxu0 0
        %1002 = vmatprep.subr.bf16.mxu0 0
        %1003 = vmatpush1.bf16.xpose.msra.mxu0 0
        %1004 = vmatprep.subr.bf16.mxu0 0
        %1005 = vmatpush1.bf16.xpose.msra.mxu0 0
        %1006 = vmatprep.subr.bf16.mxu0 0
        %1007 = vmatpush1.bf16.xpose.msra.mxu0 0
        %1008 = vmatprep.mubr.bf16.mxu0 0
        %1009 = vmatmul.mubr.bf16.gmra.mrb[0].mxu0 %v971
        %v1010 = vpop.f32.mrb[0].mxu0
        %v1011 = vadd.f32 0.0, %v1010
        %v1012 = vpop.f32.mrb[0].mxu0
        %v1013 = vpop.f32.mrb[0].mxu0
        %v1014 = vpop.f32.mrb[0].mxu0
        %1015 = vdwg.mxu0
        %v1016 = vsel %vm605, %v1011, -inf
        %1017 = vmax.xlane.f32.xlu0 %v1016
        %v1018 = vpop.xlane.xlu0 %1017
        %v1019 = vsub.f32 %v1011, %v1018
        %v1020 = vmul.f32 %v1019, 1.442695
        %v1021 = vpow.pop %v1020
        %v1022 = vsel %vm605, %v1021, 0.0
        %1023 = vadd.xlane.f32.xlu0 %v1022
        %v1024 = vpop.xlane.xlu0 %1023
        %v1025 = vpack.c.bf16 %v1021, %v1021
        %v1027 = vunpack.c.l.b16 %v962
        %v1028 = vpack.c.b16 %v1027, %v1027
        %1029 = vrot.lane.b32.xlu0 %v1028, 104
        %v1030 = vpop.permute.xlu0 %1029
        %v1032 = vsel %vm605, %v1025, 0
        %v1035 = vsel %vm665, %v1030, 0
        %1037 = vmatprep.subr.bf16.mxu0 0
        %1038 = vmatpush1.bf16.msra.mxu0 %v1035
        %1039 = vmatprep.subr.bf16.mxu0 0
        %1040 = vmatpush1.bf16.msra.mxu0 0
        %1041 = vmatprep.subr.bf16.mxu0 0
        %1042 = vmatpush1.bf16.msra.mxu0 0
        %1043 = vmatprep.subr.bf16.mxu0 0
        %1044 = vmatpush1.bf16.msra.mxu0 0
        %1045 = vmatprep.subr.bf16.mxu0 0
        %1046 = vmatpush1.bf16.msra.mxu0 0
        %1047 = vmatprep.subr.bf16.mxu0 0
        %1048 = vmatpush1.bf16.msra.mxu0 0
        %1049 = vmatprep.subr.bf16.mxu0 0
        %1050 = vmatpush1.bf16.msra.mxu0 0
        %1051 = vmatprep.subr.bf16.mxu0 0
        %1052 = vmatpush1.bf16.msra.mxu0 0
        %1053 = vmatprep.subr.bf16.mxu0 0
        %1054 = vmatpush1.bf16.msra.mxu0 0
        %1055 = vmatprep.subr.bf16.mxu0 0
        %1056 = vmatpush1.bf16.msra.mxu0 0
        %1057 = vmatprep.subr.bf16.mxu0 0
        %1058 = vmatpush1.bf16.msra.mxu0 0
        %1059 = vmatprep.subr.bf16.mxu0 0
        %1060 = vmatpush1.bf16.msra.mxu0 0
        %1061 = vmatprep.subr.bf16.mxu0 0
        %1062 = vmatpush1.bf16.msra.mxu0 0
        %1063 = vmatprep.subr.bf16.mxu0 0
        %1064 = vmatpush1.bf16.msra.mxu0 0
        %1065 = vmatprep.subr.bf16.mxu0 0
        %1066 = vmatpush1.bf16.msra.mxu0 0
        %1067 = vmatprep.subr.bf16.mxu0 0
        %1068 = vmatpush1.bf16.msra.mxu0 0
        %1069 = vmatprep.mubr.bf16.mxu0 0
        %1070 = vmatmul.mubr.bf16.gmra.mrb[0].mxu0 %v1032
        %v1071 = vpop.f32.mrb[0].mxu0
        %v1072 = vadd.f32 0.0, %v1071
        %v1073 = vpop.f32.mrb[0].mxu0
        %v1074 = vpop.f32.mrb[0].mxu0
        %v1075 = vpop.f32.mrb[0].mxu0
        %1076 = vdwg.mxu0
        %v1077 = vrcp.pop %v1024
        %v1078 = vmul.f32 %v1072, %v1077
        %1080 = vrot.lane.b32.xlu0 %v1078, 24
        %v1081 = vpop.permute.xlu0 %1080
        %vm1083 = vcmask 261312
        %1084 = vst.msk [vmem:[#allocation4] sm:$0xff] %vm1083, %v1081
        %v1085 = vld [vmem:[#allocation4] sm:$0xff]
        %v1086 = vpack.c.bf16 %v1085, %v1085
        %v1087 = vld [vmem:[%s5] sm:$0xf]
        %v1088 = vld [vmem:[%s5 + $0x4] sm:$0xf]
        %v1089 = vld [vmem:[%s5 + $0x8] sm:$0xf]
        %v1090 = vld [vmem:[%s5 + $0xc] sm:$0xf]
        %v1091 = vld [vmem:[%s6] sm:$0x1]
        %v1093 = vlaneseq
        %v1094 = vshrl.u32 %v1093, 7
        %v1095 = vsub.s32 0, %v1094
        %v1096 = vrot.slane %v1091, %v1095
        %v1102 = vunpack.c.l.b16 %v1087
        %v1103 = vunpack.c.l.b16 %v1088
        %v1104 = vunpack.c.l.b16 %v1089
        %v1105 = vunpack.c.l.b16 %v1090
        %v1106 = vpack.c.b16 %v1103, %v1102
        %v1107 = vpack.c.b16 %v1105, %v1104
        %v1111 = vsel %vm558, %v1086, 0
        %1113 = vmatprep.subr.bf16.mxu0 0
        %1114 = vmatpush1.bf16.msra.mxu0 %v1106
        %1115 = vmatprep.subr.bf16.mxu0 0
        %1116 = vmatpush1.bf16.msra.mxu0 %v1107
        %1117 = vmatprep.subr.bf16.mxu0 0
        %1118 = vmatpush1.bf16.msra.mxu0 0
        %1119 = vmatprep.subr.bf16.mxu0 0
        %1120 = vmatpush1.bf16.msra.mxu0 0
        %1121 = vmatprep.subr.bf16.mxu0 0
        %1122 = vmatpush1.bf16.msra.mxu0 0
        %1123 = vmatprep.subr.bf16.mxu0 0
        %1124 = vmatpush1.bf16.msra.mxu0 0
        %1125 = vmatprep.subr.bf16.mxu0 0
        %1126 = vmatpush1.bf16.msra.mxu0 0
        %1127 = vmatprep.subr.bf16.mxu0 0
        %1128 = vmatpush1.bf16.msra.mxu0 0
        %1129 = vmatprep.subr.bf16.mxu0 0
        %1130 = vmatpush1.bf16.msra.mxu0 0
        %1131 = vmatprep.subr.bf16.mxu0 0
        %1132 = vmatpush1.bf16.msra.mxu0 0
        %1133 = vmatprep.subr.bf16.mxu0 0
        %1134 = vmatpush1.bf16.msra.mxu0 0
        %1135 = vmatprep.subr.bf16.mxu0 0
        %1136 = vmatpush1.bf16.msra.mxu0 0
        %1137 = vmatprep.subr.bf16.mxu0 0
        %1138 = vmatpush1.bf16.msra.mxu0 0
        %1139 = vmatprep.subr.bf16.mxu0 0
        %1140 = vmatpush1.bf16.msra.mxu0 0
        %1141 = vmatprep.subr.bf16.mxu0 0
        %1142 = vmatpush1.bf16.msra.mxu0 0
        %1143 = vmatprep.subr.bf16.mxu0 0
        %1144 = vmatpush1.bf16.msra.mxu0 0
        %1145 = vmatprep.mubr.bf16.mxu0 0
        %1146 = vmatmul.mubr.bf16.gmra.mrb[0].mxu0 %v1111
        %v1147 = vpop.f32.mrb[0].mxu0
        %v1148 = vadd.f32 %v1096, %v1147
        %v1149 = vpop.f32.mrb[0].mxu0
        %v1150 = vpop.f32.mrb[0].mxu0
        %v1151 = vpop.f32.mrb[0].mxu0
        %1152 = vdwg.mxu0
        %1153 = vst.msk [vmem:[%s396] sm:$0xff] %vm558, %v1148
        %s1154 = sand.u32 %s214, 1
        %s1155 = scalar_lea.sflag [#allocation7], %s1154
        %s1156 = sand.u32 %s214, 1
        %s1157 = smul.addr %s1156, 8
        %s1158 = scalar_lea.vmem [#allocation13], %s1157
        // Predicated region
        $region69: #{tpu_custom_call.1} parent=47 // pred_check
          %p1159 = pneg %p224
        $region70: #{tpu_custom_call.1} parent=47 // pred_check_branch
          %1161 = sbr.rel (%p1159) target = $region72
        $region71: #{tpu_custom_call.1} parent=47 // pred_region
          %s1163 = ssub.s32 128, 128
          %1164 = vsyncadd %s1155, %s1163
          %s1165 = sadd.s32 %s33, %s32
          %s1166 = smul.addr %s1165, 128
          %s1167 = scalar_lea.hbm %s7, %s1166
          %s1169 = sshll.u32 %s1158, 4
          %s1170 = int_to_ptr.vmem [resolvable:$true] %s1169
          %1172 = dma.vmem_to_hbm [thread:$0]  %s1170, 128, %s1167, %s1155
        $region72: #{tpu_custom_call.1} parent=47 // pred_fallthru
          _
      $region48: #{tpu_custom_call.1} parent=5 // pred_fallthru
        _
      %p1173 = scmp.le.s32.totalorder 2, %s23
      // Predicated region
      $region73: #{tpu_custom_call.1} parent=5 // pred_check
        %p1174 = pneg %p1173
      $region74: #{tpu_custom_call.1} parent=5 // pred_check_branch
        %1176 = sbr.rel (%p1174) target = $region76
      $region75: #{tpu_custom_call.1} parent=5 // pred_region
        %s1177 = ssub.s32 %s23, 2
        // Predicated region
        $region77: #{tpu_custom_call.1} parent=75 // pred_check
          %p1178 = pneg %p230
        $region78: #{tpu_custom_call.1} parent=75 // pred_check_branch
          %1180 = sbr.rel (%p1178) target = $region80
        $region79: #{tpu_custom_call.1} parent=75 // pred_region
          %s1181 = sand.u32 %s215, 1
          %s1182 = scalar_lea.sflag [#allocation7], %s1181
          %s1183 = sand.u32 %s215, 1
          %s1184 = smul.addr %s1183, 8
          %s1185 = scalar_lea.vmem [#allocation13], %s1184
          %1186 = dma.done %s1182, 128
        $region80: #{tpu_custom_call.1} parent=75 // pred_fallthru
          _
      $region76: #{tpu_custom_call.1} parent=5 // pred_fallthru
        _
    $region6: #{tpu_custom_call.1} parent=1 // loop_footer
      %s27 = sadd.s32 1, %s23
    $region7: #{tpu_custom_call.1} parent=1 // loop_footer_branch
      %22 = sbr.rel target = $region3
    $region8: #{tpu_custom_call.1} parent=1 // loop_exit
      _
    %1187 = vsyncpa [#allocation6], 1
    %s1188 = scalar_lea.sflag [#allocation6], 1
    %1189 = vsyncpa %s1188, 1
    %1190 = vsyncpa [#allocation9], 1
    %s1191 = scalar_lea.sflag [#allocation9], 1
    %1192 = vsyncpa %s1191, 1
    %1193 = vsyncpa [#allocation12], 1
    %1194 = vsyncpa [#allocation7], 1
    %s1195 = scalar_lea.sflag [#allocation7], 1
    %1196 = vsyncpa %s1195, 1

</llo_original>
